<compile_context>
chip_gen: v7x
topology: tpu7x:2x2x1
jax: 0.10.0
libtpu: 0.0.40
codegen_flags: <defaults>
</compile_context>

<pallas_src>
import functools

import jax
import jax.numpy as jnp
from jax.experimental import pallas as pl
from jax.experimental.pallas import tpu as pltpu

NUM_CLASSES = 4
C = 512
C_HID = C // 8            # 64  (attention bottleneck)
CLS_HID = 256             # classifier hidden
PAD_CLASSES = 128         # lane-pad the tiny class dim; sliced back to 4 in the wrapper
LANE = 128                # chunk width for the fused gate+pool loop


def head_kernel(x_ref, w1_ref, b1_ref, w2_ref, b2_ref,
                wc1_ref, bc1_ref, wc2_ref, bc2_ref, out_ref, *, batch, hw):
    # x_ref: (B*HW, C) bf16 — all batches processed in one pass (M = B*HW = 128).
    x = x_ref[...]                                                      # (BHW, C) bf16

    # AttentionModule bottleneck: Conv1x1 -> ReLU, as one MXU matmul over all rows.
    a1 = jnp.dot(x, w1_ref[...], preferred_element_type=jnp.float32) + b1_ref[...]
    a1 = jnp.maximum(a1, 0.0)                                           # (BHW, C_HID) f32
    a1_bf = a1.astype(jnp.bfloat16)

    # Fused Conv1x1 -> Sigmoid gate -> spatial mean, chunked over 128-lane slices of C
    # so x/att/attended are never live as full (BHW, C) f32 temporaries at once.
    pooled_chunks = []
    for c0 in range(0, C, LANE):
        w2_c = w2_ref[:, c0:c0 + LANE]                                  # (C_HID, 128) bf16
        b2_c = b2_ref[:, c0:c0 + LANE]                                  # (1, 128) f32
        att_c = jax.nn.sigmoid(
            jnp.dot(a1_bf, w2_c, preferred_element_type=jnp.float32) + b2_c)   # (BHW, 128)
        attended_c = x[:, c0:c0 + LANE].astype(jnp.float32) * att_c     # (BHW, 128) f32
        # AdaptiveAvgPool2d((1,1)) == mean over the HW rows of each batch.
        pooled_chunks.append(
            jnp.mean(attended_c.reshape(batch, hw, LANE), axis=1))      # (B, 128)
    pooled = jnp.concatenate(pooled_chunks, axis=-1)                    # (B, C) f32

    # Classifier: Dropout(id) -> Linear(512,256) -> ReLU -> Dropout(id) -> Linear(256,4),
    # batched over B in a single pair of MXU passes.
    h = jnp.dot(pooled.astype(jnp.bfloat16), wc1_ref[...],
                preferred_element_type=jnp.float32) + bc1_ref[...]
    h = jnp.maximum(h, 0.0)                                             # (B, CLS_HID)
    logits = jnp.dot(h.astype(jnp.bfloat16), wc2_ref[...],
                     preferred_element_type=jnp.float32) + bc2_ref[...]
    out_ref[...] = logits                                               # (B, PAD_CLASSES)


def belt_head_forward(feat_nchw, params):
    B, Cc, H, W = feat_nchw.shape
    assert Cc == C
    HW = H * W
    BHW = B * HW
    assert HW % 8 == 0 and BHW % 8 == 0

    # NCHW -> (B*HW, C), bf16: one fused wrapper expression (no extra f32 copy).
    x = jnp.transpose(feat_nchw, (0, 2, 3, 1)).reshape(BHW, Cc).astype(jnp.bfloat16)
    w1, b1, w2, b2, wc1, bc1, wc2, bc2 = params
    w1b, w2b = w1.astype(jnp.bfloat16), w2.astype(jnp.bfloat16)
    wc1b, wc2b = wc1.astype(jnp.bfloat16), wc2.astype(jnp.bfloat16)

    def full(shape):
        return pl.BlockSpec(shape, lambda i, _n=len(shape): (0,) * _n)

    kernel = functools.partial(head_kernel, batch=B, hw=HW)

    flops = (2 * BHW * C * C_HID * 2            # attention matmuls
             + 2 * B * C * CLS_HID              # classifier linear1
             + 2 * B * CLS_HID * PAD_CLASSES)   # classifier linear2 (padded)
    bytes_accessed = int(
        x.size * 2
        + (w1b.size + w2b.size + wc1b.size + wc2b.size) * 2
        + (b1.size + b2.size + bc1.size + bc2.size) * 4
        + B * PAD_CLASSES * 4)

    out = pl.pallas_call(
        kernel,
        out_shape=jax.ShapeDtypeStruct((B, PAD_CLASSES), jnp.float32),
        grid_spec=pltpu.PrefetchScalarGridSpec(
            num_scalar_prefetch=0,
            grid=(1,),                                      # single invocation: ~1.4 MiB total
            in_specs=[
                full((BHW, Cc)),                            # all batches' features at once
                full((C, C_HID)), full((1, C_HID)),         # attention conv1
                full((C_HID, C)), full((1, C)),             # attention conv2
                full((C, CLS_HID)), full((1, CLS_HID)),     # classifier linear1
                full((CLS_HID, PAD_CLASSES)), full((1, PAD_CLASSES)),  # classifier linear2
            ],
            out_specs=pl.BlockSpec((B, PAD_CLASSES), lambda i: (0, 0)),
        ),
        compiler_params=pltpu.CompilerParams(dimension_semantics=("arbitrary",)),
        cost_estimate=pl.CostEstimate(flops=flops, transcendentals=BHW * C,
                                      bytes_accessed=bytes_accessed),
    )(x, w1b, b1, w2b, b2, wc1b, bc1, wc2b, bc2)
    return out[:, :NUM_CLASSES]


def init_params(key):
    ks = jax.random.split(key, 4)

    def xavier(k, shape):
        fan_in, fan_out = shape
        bound = (6.0 / (fan_in + fan_out)) ** 0.5
        return jax.random.uniform(k, shape, jnp.float32, -bound, bound)

    # Attention 1x1 convs (weights stored as [C_in, C_out] for channels-last matmul).
    w1 = xavier(ks[0], (C, C_HID))
    b1 = jnp.zeros((1, C_HID), jnp.float32)
    w2 = xavier(ks[1], (C_HID, C))
    b2 = jnp.zeros((1, C), jnp.float32)
    # Classifier linears: xavier_uniform weights, zero bias (matches _initialize_weights).
    wc1 = xavier(ks[2], (C, CLS_HID))
    bc1 = jnp.zeros((1, CLS_HID), jnp.float32)
    wc2_real = xavier(ks[3], (CLS_HID, NUM_CLASSES))
    wc2 = jnp.zeros((CLS_HID, PAD_CLASSES), jnp.float32).at[:, :NUM_CLASSES].set(wc2_real)
    bc2 = jnp.zeros((1, PAD_CLASSES), jnp.float32)
    return (w1, b1, w2, b2, wc1, bc1, wc2, bc2)


def reference(feat_nchw, params):
    # Pure-JAX f32 reference of the same head, for correctness checking.
    w1, b1, w2, b2, wc1, bc1, wc2, bc2 = params
    B, Cc, H, W = feat_nchw.shape
    x = jnp.transpose(feat_nchw, (0, 2, 3, 1)).reshape(B, H * W, Cc).astype(jnp.float32)
    a1 = jnp.maximum(jnp.einsum('bnc,ck->bnk', x, w1) + b1[0], 0.0)
    att = jax.nn.sigmoid(jnp.einsum('bnk,kc->bnc', a1, w2) + b2[0])
    pooled = jnp.mean(x * att, axis=1)
    h = jnp.maximum(pooled @ wc1 + bc1[0], 0.0)
    return (h @ wc2 + bc2[0])[:, :NUM_CLASSES]


if __name__ == "__main__":
    key = jax.random.PRNGKey(0)
    k_feat, k_params = jax.random.split(key)

    # Backbone (resnet18) output feature map: [B, 512, H/32, W/32]; small spatial = 8x8.
    B, H, W = 2, 8, 8
    feats = jax.random.normal(k_feat, (B, C, H, W), jnp.float32)
    params = init_params(k_params)

    out = jax.block_until_ready(belt_head_forward(feats, params))

    ref = reference(feats, params)
    assert out.shape == (B, NUM_CLASSES), out.shape
    # bf16 matmul operands (f32 accumulate) -> loosened tolerance vs the f32 reference.
    assert jnp.allclose(out, ref, atol=5e-2, rtol=5e-2), (out, ref)

    print("KERNEL_OK")
</pallas_src>

<mosaic_0001>
module attributes {stable_mosaic.version = 11 : i64} {
  func.func @head_kernel(%arg0: i32, %arg1: memref<128x512xbf16, #tpu.memory_space<vmem>>, %arg2: memref<512x64xbf16, #tpu.memory_space<vmem>>, %arg3: memref<1x64xf32, #tpu.memory_space<vmem>>, %arg4: memref<64x512xbf16, #tpu.memory_space<vmem>>, %arg5: memref<1x512xf32, #tpu.memory_space<vmem>>, %arg6: memref<512x256xbf16, #tpu.memory_space<vmem>>, %arg7: memref<1x256xf32, #tpu.memory_space<vmem>>, %arg8: memref<256x128xbf16, #tpu.memory_space<vmem>>, %arg9: memref<1x128xf32, #tpu.memory_space<vmem>>, %arg10: memref<2x128xf32, #tpu.memory_space<vmem>>) attributes {dimension_semantics = [#tpu.dimension_semantics<arbitrary>], iteration_bounds = array<i64: 1>, scalar_prefetch = 0 : i64, scratch_operands = 0 : i64, tpu.core_type = #tpu.core_type<tc>, window_params = [{pipeline_mode = #tpu.pipeline_mode<synchronous>, transform_indices = @transform_0, window_bounds = array<i64: 128, 512>}, {pipeline_mode = #tpu.pipeline_mode<synchronous>, transform_indices = @transform_1, window_bounds = array<i64: 512, 64>}, {pipeline_mode = #tpu.pipeline_mode<synchronous>, transform_indices = @transform_2, window_bounds = array<i64: 1, 64>}, {pipeline_mode = #tpu.pipeline_mode<synchronous>, transform_indices = @transform_3, window_bounds = array<i64: 64, 512>}, {pipeline_mode = #tpu.pipeline_mode<synchronous>, transform_indices = @transform_4, window_bounds = array<i64: 1, 512>}, {pipeline_mode = #tpu.pipeline_mode<synchronous>, transform_indices = @transform_5, window_bounds = array<i64: 512, 256>}, {pipeline_mode = #tpu.pipeline_mode<synchronous>, transform_indices = @transform_6, window_bounds = array<i64: 1, 256>}, {pipeline_mode = #tpu.pipeline_mode<synchronous>, transform_indices = @transform_7, window_bounds = array<i64: 256, 128>}, {pipeline_mode = #tpu.pipeline_mode<synchronous>, transform_indices = @transform_8, window_bounds = array<i64: 1, 128>}, {pipeline_mode = #tpu.pipeline_mode<synchronous>, transform_indices = @transform_9, window_bounds = array<i64: 2, 128>}]} {
    %c0 = arith.constant 0 : index
    %c0_0 = arith.constant 0 : index
    %0 = vector.load %arg1[%c0, %c0_0] : memref<128x512xbf16, #tpu.memory_space<vmem>>, vector<128x512xbf16>
    %c0_1 = arith.constant 0 : index
    %c0_2 = arith.constant 0 : index
    %1 = vector.load %arg2[%c0_1, %c0_2] : memref<512x64xbf16, #tpu.memory_space<vmem>>, vector<512x64xbf16>
    %cst = arith.constant dense<0.000000e+00> : vector<128x64xf32>
    %2 = tpu.matmul %0, %1, %cst {dimension_numbers = #tpu.dot_dimension_numbers<[1], [0], [0], [1], [0, 0, 1, 1], [], []>} : vector<128x512xbf16>, vector<512x64xbf16>, vector<128x64xf32> -> vector<128x64xf32>
    %c0_3 = arith.constant 0 : index
    %c0_4 = arith.constant 0 : index
    %3 = vector.load %arg3[%c0_3, %c0_4] : memref<1x64xf32, #tpu.memory_space<vmem>>, vector<1x64xf32>
    %4 = vector.broadcast %3 : vector<1x64xf32> to vector<128x64xf32>
    %5 = arith.addf %2, %4 : vector<128x64xf32>
    %cst_5 = arith.constant 0.000000e+00 : f32
    %6 = vector.broadcast %cst_5 : f32 to vector<128x64xf32>
    %7 = arith.maximumf %5, %6 : vector<128x64xf32>
    %8 = arith.truncf %7 : vector<128x64xf32> to vector<128x64xbf16>
    %c0_6 = arith.constant 0 : index
    %c0_7 = arith.constant 0 : index
    %9 = vector.load %arg4[%c0_6, %c0_7] : memref<64x512xbf16, #tpu.memory_space<vmem>>, vector<64x128xbf16>
    %c0_8 = arith.constant 0 : index
    %c0_9 = arith.constant 0 : index
    %10 = vector.load %arg5[%c0_8, %c0_9] : memref<1x512xf32, #tpu.memory_space<vmem>>, vector<1x128xf32>
    %cst_10 = arith.constant dense<0.000000e+00> : vector<128x128xf32>
    %11 = tpu.matmul %8, %9, %cst_10 {dimension_numbers = #tpu.dot_dimension_numbers<[1], [0], [0], [1], [0, 0, 1, 1], [], []>} : vector<128x64xbf16>, vector<64x128xbf16>, vector<128x128xf32> -> vector<128x128xf32>
    %12 = vector.broadcast %10 : vector<1x128xf32> to vector<128x128xf32>
    %13 = arith.addf %11, %12 : vector<128x128xf32>
    %14 = arith.negf %13 : vector<128x128xf32>
    %15 = math.exp %14 : vector<128x128xf32>
    %cst_11 = arith.constant 1.000000e+00 : f32
    %16 = vector.broadcast %cst_11 : f32 to vector<128x128xf32>
    %17 = arith.addf %16, %15 : vector<128x128xf32>
    %18 = arith.divf %16, %17 : vector<128x128xf32>
    %19 = vector.extract_strided_slice %0 {offsets = [0, 0], sizes = [128, 128], strides = [1, 1]} : vector<128x512xbf16> to vector<128x128xbf16>
    %20 = arith.extf %19 : vector<128x128xbf16> to vector<128x128xf32>
    %21 = arith.mulf %20, %18 : vector<128x128xf32>
    %22 = vector.shape_cast %21 : vector<128x128xf32> to vector<2x64x128xf32>
    %cst_12 = arith.constant dense<0.000000e+00> : vector<2x128xf32>
    %23 = vector.multi_reduction <add>, %22, %cst_12 [1] : vector<2x64x128xf32> to vector<2x128xf32>
    %cst_13 = arith.constant 6.400000e+01 : f32
    %24 = vector.broadcast %cst_13 : f32 to vector<2x128xf32>
    %25 = arith.divf %23, %24 : vector<2x128xf32>
    %c0_14 = arith.constant 0 : index
    %c128 = arith.constant 128 : index
    %26 = vector.load %arg4[%c0_14, %c128] : memref<64x512xbf16, #tpu.memory_space<vmem>>, vector<64x128xbf16>
    %c0_15 = arith.constant 0 : index
    %c128_16 = arith.constant 128 : index
    %27 = vector.load %arg5[%c0_15, %c128_16] : memref<1x512xf32, #tpu.memory_space<vmem>>, vector<1x128xf32>
    %cst_17 = arith.constant dense<0.000000e+00> : vector<128x128xf32>
    %28 = tpu.matmul %8, %26, %cst_17 {dimension_numbers = #tpu.dot_dimension_numbers<[1], [0], [0], [1], [0, 0, 1, 1], [], []>} : vector<128x64xbf16>, vector<64x128xbf16>, vector<128x128xf32> -> vector<128x128xf32>
    %29 = vector.broadcast %27 : vector<1x128xf32> to vector<128x128xf32>
    %30 = arith.addf %28, %29 : vector<128x128xf32>
    %31 = arith.negf %30 : vector<128x128xf32>
    %32 = math.exp %31 : vector<128x128xf32>
    %cst_18 = arith.constant 1.000000e+00 : f32
    %33 = vector.broadcast %cst_18 : f32 to vector<128x128xf32>
    %34 = arith.addf %33, %32 : vector<128x128xf32>
    %35 = arith.divf %33, %34 : vector<128x128xf32>
    %36 = vector.extract_strided_slice %0 {offsets = [0, 128], sizes = [128, 128], strides = [1, 1]} : vector<128x512xbf16> to vector<128x128xbf16>
    %37 = arith.extf %36 : vector<128x128xbf16> to vector<128x128xf32>
    %38 = arith.mulf %37, %35 : vector<128x128xf32>
    %39 = vector.shape_cast %38 : vector<128x128xf32> to vector<2x64x128xf32>
    %cst_19 = arith.constant dense<0.000000e+00> : vector<2x128xf32>
    %40 = vector.multi_reduction <add>, %39, %cst_19 [1] : vector<2x64x128xf32> to vector<2x128xf32>
    %cst_20 = arith.constant 6.400000e+01 : f32
    %41 = vector.broadcast %cst_20 : f32 to vector<2x128xf32>
    %42 = arith.divf %40, %41 : vector<2x128xf32>
    %c0_21 = arith.constant 0 : index
    %c256 = arith.constant 256 : index
    %43 = vector.load %arg4[%c0_21, %c256] : memref<64x512xbf16, #tpu.memory_space<vmem>>, vector<64x128xbf16>
    %c0_22 = arith.constant 0 : index
    %c256_23 = arith.constant 256 : index
    %44 = vector.load %arg5[%c0_22, %c256_23] : memref<1x512xf32, #tpu.memory_space<vmem>>, vector<1x128xf32>
    %cst_24 = arith.constant dense<0.000000e+00> : vector<128x128xf32>
    %45 = tpu.matmul %8, %43, %cst_24 {dimension_numbers = #tpu.dot_dimension_numbers<[1], [0], [0], [1], [0, 0, 1, 1], [], []>} : vector<128x64xbf16>, vector<64x128xbf16>, vector<128x128xf32> -> vector<128x128xf32>
    %46 = vector.broadcast %44 : vector<1x128xf32> to vector<128x128xf32>
    %47 = arith.addf %45, %46 : vector<128x128xf32>
    %48 = arith.negf %47 : vector<128x128xf32>
    %49 = math.exp %48 : vector<128x128xf32>
    %cst_25 = arith.constant 1.000000e+00 : f32
    %50 = vector.broadcast %cst_25 : f32 to vector<128x128xf32>
    %51 = arith.addf %50, %49 : vector<128x128xf32>
    %52 = arith.divf %50, %51 : vector<128x128xf32>
    %53 = vector.extract_strided_slice %0 {offsets = [0, 256], sizes = [128, 128], strides = [1, 1]} : vector<128x512xbf16> to vector<128x128xbf16>
    %54 = arith.extf %53 : vector<128x128xbf16> to vector<128x128xf32>
    %55 = arith.mulf %54, %52 : vector<128x128xf32>
    %56 = vector.shape_cast %55 : vector<128x128xf32> to vector<2x64x128xf32>
    %cst_26 = arith.constant dense<0.000000e+00> : vector<2x128xf32>
    %57 = vector.multi_reduction <add>, %56, %cst_26 [1] : vector<2x64x128xf32> to vector<2x128xf32>
    %cst_27 = arith.constant 6.400000e+01 : f32
    %58 = vector.broadcast %cst_27 : f32 to vector<2x128xf32>
    %59 = arith.divf %57, %58 : vector<2x128xf32>
    %c0_28 = arith.constant 0 : index
    %c384 = arith.constant 384 : index
    %60 = vector.load %arg4[%c0_28, %c384] : memref<64x512xbf16, #tpu.memory_space<vmem>>, vector<64x128xbf16>
    %c0_29 = arith.constant 0 : index
    %c384_30 = arith.constant 384 : index
    %61 = vector.load %arg5[%c0_29, %c384_30] : memref<1x512xf32, #tpu.memory_space<vmem>>, vector<1x128xf32>
    %cst_31 = arith.constant dense<0.000000e+00> : vector<128x128xf32>
    %62 = tpu.matmul %8, %60, %cst_31 {dimension_numbers = #tpu.dot_dimension_numbers<[1], [0], [0], [1], [0, 0, 1, 1], [], []>} : vector<128x64xbf16>, vector<64x128xbf16>, vector<128x128xf32> -> vector<128x128xf32>
    %63 = vector.broadcast %61 : vector<1x128xf32> to vector<128x128xf32>
    %64 = arith.addf %62, %63 : vector<128x128xf32>
    %65 = arith.negf %64 : vector<128x128xf32>
    %66 = math.exp %65 : vector<128x128xf32>
    %cst_32 = arith.constant 1.000000e+00 : f32
    %67 = vector.broadcast %cst_32 : f32 to vector<128x128xf32>
    %68 = arith.addf %67, %66 : vector<128x128xf32>
    %69 = arith.divf %67, %68 : vector<128x128xf32>
    %70 = vector.extract_strided_slice %0 {offsets = [0, 384], sizes = [128, 128], strides = [1, 1]} : vector<128x512xbf16> to vector<128x128xbf16>
    %71 = arith.extf %70 : vector<128x128xbf16> to vector<128x128xf32>
    %72 = arith.mulf %71, %69 : vector<128x128xf32>
    %73 = vector.shape_cast %72 : vector<128x128xf32> to vector<2x64x128xf32>
    %cst_33 = arith.constant dense<0.000000e+00> : vector<2x128xf32>
    %74 = vector.multi_reduction <add>, %73, %cst_33 [1] : vector<2x64x128xf32> to vector<2x128xf32>
    %cst_34 = arith.constant 6.400000e+01 : f32
    %75 = vector.broadcast %cst_34 : f32 to vector<2x128xf32>
    %76 = arith.divf %74, %75 : vector<2x128xf32>
    %77 = tpu.concatenate %25, %42, %59, %76 in 1 : vector<2x128xf32>, vector<2x128xf32>, vector<2x128xf32>, vector<2x128xf32> -> vector<2x512xf32>
    %78 = arith.truncf %77 : vector<2x512xf32> to vector<2x512xbf16>
    %c0_35 = arith.constant 0 : index
    %c0_36 = arith.constant 0 : index
    %79 = vector.load %arg6[%c0_35, %c0_36] : memref<512x256xbf16, #tpu.memory_space<vmem>>, vector<512x256xbf16>
    %cst_37 = arith.constant dense<0.000000e+00> : vector<2x256xf32>
    %80 = tpu.matmul %78, %79, %cst_37 {dimension_numbers = #tpu.dot_dimension_numbers<[1], [0], [0], [1], [0, 0, 1, 1], [], []>} : vector<2x512xbf16>, vector<512x256xbf16>, vector<2x256xf32> -> vector<2x256xf32>
    %c0_38 = arith.constant 0 : index
    %c0_39 = arith.constant 0 : index
    %81 = vector.load %arg7[%c0_38, %c0_39] : memref<1x256xf32, #tpu.memory_space<vmem>>, vector<1x256xf32>
    %82 = vector.broadcast %81 : vector<1x256xf32> to vector<2x256xf32>
    %83 = arith.addf %80, %82 : vector<2x256xf32>
    %cst_40 = arith.constant 0.000000e+00 : f32
    %84 = vector.broadcast %cst_40 : f32 to vector<2x256xf32>
    %85 = arith.maximumf %83, %84 : vector<2x256xf32>
    %86 = arith.truncf %85 : vector<2x256xf32> to vector<2x256xbf16>
    %c0_41 = arith.constant 0 : index
    %c0_42 = arith.constant 0 : index
    %87 = vector.load %arg8[%c0_41, %c0_42] : memref<256x128xbf16, #tpu.memory_space<vmem>>, vector<256x128xbf16>
    %cst_43 = arith.constant dense<0.000000e+00> : vector<2x128xf32>
    %88 = tpu.matmul %86, %87, %cst_43 {dimension_numbers = #tpu.dot_dimension_numbers<[1], [0], [0], [1], [0, 0, 1, 1], [], []>} : vector<2x256xbf16>, vector<256x128xbf16>, vector<2x128xf32> -> vector<2x128xf32>
    %c0_44 = arith.constant 0 : index
    %c0_45 = arith.constant 0 : index
    %89 = vector.load %arg9[%c0_44, %c0_45] : memref<1x128xf32, #tpu.memory_space<vmem>>, vector<1x128xf32>
    %90 = vector.broadcast %89 : vector<1x128xf32> to vector<2x128xf32>
    %91 = arith.addf %88, %90 : vector<2x128xf32>
    %c0_46 = arith.constant 0 : index
    %c0_47 = arith.constant 0 : index
    %92 = vector.load %arg10[%c0_46, %c0_47] : memref<2x128xf32, #tpu.memory_space<vmem>>, vector<2x128xf32>
    tpu.vector_store %arg10[%c0_46, %c0_47], %91 {strides = array<i32>} : memref<2x128xf32, #tpu.memory_space<vmem>>, vector<2x128xf32>,
    return
  }
  func.func @transform_0(%arg0: i32) -> (i32, i32) {
    %c0_i32 = arith.constant 0 : i32
    %c0_i32_0 = arith.constant 0 : i32
    %c0_i32_1 = arith.constant 0 : i32
    return %c0_i32, %c0_i32_0 : i32, i32
  }
  func.func @transform_1(%arg0: i32) -> (i32, i32) {
    %c0_i32 = arith.constant 0 : i32
    %c0_i32_0 = arith.constant 0 : i32
    %c0_i32_1 = arith.constant 0 : i32
    return %c0_i32, %c0_i32_0 : i32, i32
  }
  func.func @transform_2(%arg0: i32) -> (i32, i32) {
    %c0_i32 = arith.constant 0 : i32
    %c0_i32_0 = arith.constant 0 : i32
    %c0_i32_1 = arith.constant 0 : i32
    return %c0_i32, %c0_i32_0 : i32, i32
  }
  func.func @transform_3(%arg0: i32) -> (i32, i32) {
    %c0_i32 = arith.constant 0 : i32
    %c0_i32_0 = arith.constant 0 : i32
    %c0_i32_1 = arith.constant 0 : i32
    return %c0_i32, %c0_i32_0 : i32, i32
  }
  func.func @transform_4(%arg0: i32) -> (i32, i32) {
    %c0_i32 = arith.constant 0 : i32
    %c0_i32_0 = arith.constant 0 : i32
    %c0_i32_1 = arith.constant 0 : i32
    return %c0_i32, %c0_i32_0 : i32, i32
  }
  func.func @transform_5(%arg0: i32) -> (i32, i32) {
    %c0_i32 = arith.constant 0 : i32
    %c0_i32_0 = arith.constant 0 : i32
    %c0_i32_1 = arith.constant 0 : i32
    return %c0_i32, %c0_i32_0 : i32, i32
  }
  func.func @transform_6(%arg0: i32) -> (i32, i32) {
    %c0_i32 = arith.constant 0 : i32
    %c0_i32_0 = arith.constant 0 : i32
    %c0_i32_1 = arith.constant 0 : i32
    return %c0_i32, %c0_i32_0 : i32, i32
  }
  func.func @transform_7(%arg0: i32) -> (i32, i32) {
    %c0_i32 = arith.constant 0 : i32
    %c0_i32_0 = arith.constant 0 : i32
    %c0_i32_1 = arith.constant 0 : i32
    return %c0_i32, %c0_i32_0 : i32, i32
  }
  func.func @transform_8(%arg0: i32) -> (i32, i32) {
    %c0_i32 = arith.constant 0 : i32
    %c0_i32_0 = arith.constant 0 : i32
    %c0_i32_1 = arith.constant 0 : i32
    return %c0_i32, %c0_i32_0 : i32, i32
  }
  func.func @transform_9(%arg0: i32) -> (i32, i32) {
    %c0_i32 = arith.constant 0 : i32
    %c0_i32_0 = arith.constant 0 : i32
    %c0_i32_1 = arith.constant 0 : i32
    return %c0_i32, %c0_i32_0 : i32, i32
  }
}

</mosaic_0001>

<llo_original>
// kernel: tpu_custom_call.1
$region0: #{tpu_custom_call.1}
  #allocation0 [shape = 'u32[]', space=smem, size = 0x4, offset = 0x4, fixed_abs, tag = 'smem constant byte address 0x4 - core index']
  #allocation1 [shape = 'u32[144,128]{1,0:T(1,128)}', space=vmem, size = 0x12000, scoped, tag = 'internal scratch']
  %s0 = inlined_call_operand.vmem [shape: bf16[128,512], index: 0, kind: input, shape index: {}]
  %s1 = inlined_call_operand.vmem [shape: bf16[512,64], index: 1, kind: input, shape index: {}]
  %s2 = inlined_call_operand.vmem [shape: f32[1,64], index: 2, kind: input, shape index: {}]
  %s3 = inlined_call_operand.vmem [shape: bf16[64,512], index: 3, kind: input, shape index: {}]
  %s4 = inlined_call_operand.vmem [shape: f32[1,512], index: 4, kind: input, shape index: {}]
  %s5 = inlined_call_operand.hbm [shape: bf16[512,256], index: 5, kind: input, shape index: {}]
  %s6 = inlined_call_operand.vmem [shape: f32[1,256], index: 6, kind: input, shape index: {}]
  %s7 = inlined_call_operand.hbm [shape: bf16[256,128], index: 7, kind: input, shape index: {}]
  %s8 = inlined_call_operand.vmem [shape: f32[1,128], index: 8, kind: input, shape index: {}]
  %s9 = inlined_call_operand.hbm [shape: f32[2,128], index: 9, kind: output, shape index: {}]
  %s10 = sld [smem:[#allocation0]]
  $region54: #{tpu_custom_call.1} parent=0
    _
  %s12 = ssub.s32 1, %s10
  %s13 = scalar_select 0, %s12, %s10
  $region1: #{tpu_custom_call.1} parent=0
    #allocation2 [shape = 'u8[262144]{0}', space=vmem, size = 0x40000, scoped, tag = 'input window, operand 5, single buffered']
    #allocation3 [shape = 's32[1]{0}', space=sflag, size = 0x4, scoped, tag = 'scoped memory for tpu_custom_call.1']
    #allocation4 [shape = 's32[1]{0}', space=sflag, size = 0x4, scoped, tag = 'scoped memory for tpu_custom_call.1']
    #allocation5 [shape = 'u8[65536]{0}', space=vmem, size = 0x10000, scoped, tag = 'input window, operand 7, single buffered']
    #allocation6 [shape = 's32[1]{0}', space=sflag, size = 0x4, scoped, tag = 'scoped memory for tpu_custom_call.1']
    #allocation7 [shape = 'u8[1024]{0}', space=vmem, size = 0x400, scoped, tag = 'output window, operand 0, single buffered']
    %14 = vsyncpa [#allocation3], 0
    %15 = vsyncpa [#allocation6], 0
    %16 = vsyncpa [#allocation4], 0
    // Predicated region
    $region2: #{tpu_custom_call.1} parent=1 // pred_check
      _
    $region3: #{tpu_custom_call.1} parent=1 // pred_check_branch
      %18 = sbr.rel (0) target = $region5
    $region4: #{tpu_custom_call.1} parent=1 // pred_region
      _
    $region5: #{tpu_custom_call.1} parent=1 // pred_fallthru
      _
    // Predicated region
    $region6: #{tpu_custom_call.1} parent=1 // pred_check
      _
    $region7: #{tpu_custom_call.1} parent=1 // pred_check_branch
      %20 = sbr.rel (0) target = $region9
    $region8: #{tpu_custom_call.1} parent=1 // pred_region
      _
    $region9: #{tpu_custom_call.1} parent=1 // pred_fallthru
      _
    // Predicated region
    $region10: #{tpu_custom_call.1} parent=1 // pred_check
      _
    $region11: #{tpu_custom_call.1} parent=1 // pred_check_branch
      %22 = sbr.rel (0) target = $region13
    $region12: #{tpu_custom_call.1} parent=1 // pred_region
      _
    $region13: #{tpu_custom_call.1} parent=1 // pred_fallthru
      _
    // Predicated region
    $region14: #{tpu_custom_call.1} parent=1 // pred_check
      _
    $region15: #{tpu_custom_call.1} parent=1 // pred_check_branch
      %24 = sbr.rel (0) target = $region17
    $region16: #{tpu_custom_call.1} parent=1 // pred_region
      _
    $region17: #{tpu_custom_call.1} parent=1 // pred_fallthru
      _
    // Predicated region
    $region18: #{tpu_custom_call.1} parent=1 // pred_check
      _
    $region19: #{tpu_custom_call.1} parent=1 // pred_check_branch
      %26 = sbr.rel (0) target = $region21
    $region20: #{tpu_custom_call.1} parent=1 // pred_region
      _
    $region21: #{tpu_custom_call.1} parent=1 // pred_fallthru
      _
    // Predicated region
    $region22: #{tpu_custom_call.1} parent=1 // pred_check
      _
    $region23: #{tpu_custom_call.1} parent=1 // pred_check_branch
      %28 = sbr.rel (0) target = $region25
    $region24: #{tpu_custom_call.1} parent=1 // pred_region
      %s30 = ssub.s32 8192, 8192
      %31 = vsyncadd [#allocation3], %s30
      %s32 = sshll.u32 [#allocation2], 4
      %s33 = int_to_ptr.vmem [resolvable:$true] %s32
      %38 = dma.hbm_to_vmem [thread:$0]  %s5, 8192, %s33, [#allocation3], 128, 128, 8
    $region25: #{tpu_custom_call.1} parent=1 // pred_fallthru
      _
    // Predicated region
    $region26: #{tpu_custom_call.1} parent=1 // pred_check
      _
    $region27: #{tpu_custom_call.1} parent=1 // pred_check_branch
      %40 = sbr.rel (0) target = $region29
    $region28: #{tpu_custom_call.1} parent=1 // pred_region
      _
    $region29: #{tpu_custom_call.1} parent=1 // pred_fallthru
      _
    // Predicated region
    $region30: #{tpu_custom_call.1} parent=1 // pred_check
      _
    $region31: #{tpu_custom_call.1} parent=1 // pred_check_branch
      %42 = sbr.rel (0) target = $region33
    $region32: #{tpu_custom_call.1} parent=1 // pred_region
      %s44 = ssub.s32 2048, 2048
      %45 = vsyncadd [#allocation6], %s44
      %s46 = sshll.u32 [#allocation5], 4
      %s47 = int_to_ptr.vmem [resolvable:$true] %s46
      %52 = dma.hbm_to_vmem [thread:$0]  %s7, 2048, %s47, [#allocation6], 64, 64, 4
    $region33: #{tpu_custom_call.1} parent=1 // pred_fallthru
      _
    // Predicated region
    $region34: #{tpu_custom_call.1} parent=1 // pred_check
      _
    $region35: #{tpu_custom_call.1} parent=1 // pred_check_branch
      %54 = sbr.rel (0) target = $region37
    $region36: #{tpu_custom_call.1} parent=1 // pred_region
      _
    $region37: #{tpu_custom_call.1} parent=1 // pred_fallthru
      _
    // Predicated region
    $region38: #{tpu_custom_call.1} parent=1 // pred_check
      _
    $region39: #{tpu_custom_call.1} parent=1 // pred_check_branch
      %56 = sbr.rel (0) target = $region41
    $region40: #{tpu_custom_call.1} parent=1 // pred_region
      %57 = dma.done [#allocation3], 8192
    $region41: #{tpu_custom_call.1} parent=1 // pred_fallthru
      _
    // Predicated region
    $region42: #{tpu_custom_call.1} parent=1 // pred_check
      _
    $region43: #{tpu_custom_call.1} parent=1 // pred_check_branch
      %59 = sbr.rel (0) target = $region45
    $region44: #{tpu_custom_call.1} parent=1 // pred_region
      %60 = dma.done [#allocation6], 2048
    $region45: #{tpu_custom_call.1} parent=1 // pred_fallthru
      _
    %v62 = vld [vmem:[%s0] sm:$0xff]
    %v63 = vld [vmem:[%s0 + $0x8] sm:$0xff]
    %v64 = vld [vmem:[%s0 + $0x10] sm:$0xff]
    %v65 = vld [vmem:[%s0 + $0x18] sm:$0xff]
    %v66 = vld [vmem:[%s0 + $0x20] sm:$0xff]
    %v67 = vld [vmem:[%s0 + $0x28] sm:$0xff]
    %v68 = vld [vmem:[%s0 + $0x30] sm:$0xff]
    %v69 = vld [vmem:[%s0 + $0x38] sm:$0xff]
    %v70 = vld [vmem:[%s0 + $0x40] sm:$0xff]
    %v71 = vld [vmem:[%s0 + $0x48] sm:$0xff]
    %v72 = vld [vmem:[%s0 + $0x50] sm:$0xff]
    %v73 = vld [vmem:[%s0 + $0x58] sm:$0xff]
    %v74 = vld [vmem:[%s0 + $0x60] sm:$0xff]
    %v75 = vld [vmem:[%s0 + $0x68] sm:$0xff]
    %v76 = vld [vmem:[%s0 + $0x70] sm:$0xff]
    %v77 = vld [vmem:[%s0 + $0x78] sm:$0xff]
    %v78 = vld [vmem:[%s0 + $0x80] sm:$0xff]
    %v79 = vld [vmem:[%s0 + $0x88] sm:$0xff]
    %v80 = vld [vmem:[%s0 + $0x90] sm:$0xff]
    %v81 = vld [vmem:[%s0 + $0x98] sm:$0xff]
    %v82 = vld [vmem:[%s0 + $0xa0] sm:$0xff]
    %v83 = vld [vmem:[%s0 + $0xa8] sm:$0xff]
    %v84 = vld [vmem:[%s0 + $0xb0] sm:$0xff]
    %v85 = vld [vmem:[%s0 + $0xb8] sm:$0xff]
    %v86 = vld [vmem:[%s0 + $0xc0] sm:$0xff]
    %v87 = vld [vmem:[%s0 + $0xc8] sm:$0xff]
    %v88 = vld [vmem:[%s0 + $0xd0] sm:$0xff]
    %v89 = vld [vmem:[%s0 + $0xd8] sm:$0xff]
    %v90 = vld [vmem:[%s0 + $0xe0] sm:$0xff]
    %v91 = vld [vmem:[%s0 + $0xe8] sm:$0xff]
    %v92 = vld [vmem:[%s0 + $0xf0] sm:$0xff]
    %v93 = vld [vmem:[%s0 + $0xf8] sm:$0xff]
    %v94 = vld [vmem:[%s1] sm:$0xf]
    %v95 = vld [vmem:[%s1 + $0x4] sm:$0xf]
    %v96 = vld [vmem:[%s1 + $0x8] sm:$0xf]
    %v97 = vld [vmem:[%s1 + $0xc] sm:$0xf]
    %v98 = vld [vmem:[%s1 + $0x10] sm:$0xf]
    %v99 = vld [vmem:[%s1 + $0x14] sm:$0xf]
    %v100 = vld [vmem:[%s1 + $0x18] sm:$0xf]
    %v101 = vld [vmem:[%s1 + $0x1c] sm:$0xf]
    %v102 = vld [vmem:[%s1 + $0x20] sm:$0xf]
    %v103 = vld [vmem:[%s1 + $0x24] sm:$0xf]
    %v104 = vld [vmem:[%s1 + $0x28] sm:$0xf]
    %v105 = vld [vmem:[%s1 + $0x2c] sm:$0xf]
    %v106 = vld [vmem:[%s1 + $0x30] sm:$0xf]
    %v107 = vld [vmem:[%s1 + $0x34] sm:$0xf]
    %v108 = vld [vmem:[%s1 + $0x38] sm:$0xf]
    %v109 = vld [vmem:[%s1 + $0x3c] sm:$0xf]
    %v110 = vld [vmem:[%s1 + $0x40] sm:$0xf]
    %v111 = vld [vmem:[%s1 + $0x44] sm:$0xf]
    %v112 = vld [vmem:[%s1 + $0x48] sm:$0xf]
    %v113 = vld [vmem:[%s1 + $0x4c] sm:$0xf]
    %v114 = vld [vmem:[%s1 + $0x50] sm:$0xf]
    %v115 = vld [vmem:[%s1 + $0x54] sm:$0xf]
    %v116 = vld [vmem:[%s1 + $0x58] sm:$0xf]
    %v117 = vld [vmem:[%s1 + $0x5c] sm:$0xf]
    %v118 = vld [vmem:[%s1 + $0x60] sm:$0xf]
    %v119 = vld [vmem:[%s1 + $0x64] sm:$0xf]
    %v120 = vld [vmem:[%s1 + $0x68] sm:$0xf]
    %v121 = vld [vmem:[%s1 + $0x6c] sm:$0xf]
    %v122 = vld [vmem:[%s1 + $0x70] sm:$0xf]
    %v123 = vld [vmem:[%s1 + $0x74] sm:$0xf]
    %v124 = vld [vmem:[%s1 + $0x78] sm:$0xf]
    %v125 = vld [vmem:[%s1 + $0x7c] sm:$0xf]
    %v126 = vld [vmem:[%s1 + $0x80] sm:$0xf]
    %v127 = vld [vmem:[%s1 + $0x84] sm:$0xf]
    %v128 = vld [vmem:[%s1 + $0x88] sm:$0xf]
    %v129 = vld [vmem:[%s1 + $0x8c] sm:$0xf]
    %v130 = vld [vmem:[%s1 + $0x90] sm:$0xf]
    %v131 = vld [vmem:[%s1 + $0x94] sm:$0xf]
    %v132 = vld [vmem:[%s1 + $0x98] sm:$0xf]
    %v133 = vld [vmem:[%s1 + $0x9c] sm:$0xf]
    %v134 = vld [vmem:[%s1 + $0xa0] sm:$0xf]
    %v135 = vld [vmem:[%s1 + $0xa4] sm:$0xf]
    %v136 = vld [vmem:[%s1 + $0xa8] sm:$0xf]
    %v137 = vld [vmem:[%s1 + $0xac] sm:$0xf]
    %v138 = vld [vmem:[%s1 + $0xb0] sm:$0xf]
    %v139 = vld [vmem:[%s1 + $0xb4] sm:$0xf]
    %v140 = vld [vmem:[%s1 + $0xb8] sm:$0xf]
    %v141 = vld [vmem:[%s1 + $0xbc] sm:$0xf]
    %v142 = vld [vmem:[%s1 + $0xc0] sm:$0xf]
    %v143 = vld [vmem:[%s1 + $0xc4] sm:$0xf]
    %v144 = vld [vmem:[%s1 + $0xc8] sm:$0xf]
    %v145 = vld [vmem:[%s1 + $0xcc] sm:$0xf]
    %v146 = vld [vmem:[%s1 + $0xd0] sm:$0xf]
    %v147 = vld [vmem:[%s1 + $0xd4] sm:$0xf]
    %v148 = vld [vmem:[%s1 + $0xd8] sm:$0xf]
    %v149 = vld [vmem:[%s1 + $0xdc] sm:$0xf]
    %v150 = vld [vmem:[%s1 + $0xe0] sm:$0xf]
    %v151 = vld [vmem:[%s1 + $0xe4] sm:$0xf]
    %v152 = vld [vmem:[%s1 + $0xe8] sm:$0xf]
    %v153 = vld [vmem:[%s1 + $0xec] sm:$0xf]
    %v154 = vld [vmem:[%s1 + $0xf0] sm:$0xf]
    %v155 = vld [vmem:[%s1 + $0xf4] sm:$0xf]
    %v156 = vld [vmem:[%s1 + $0xf8] sm:$0xf]
    %v157 = vld [vmem:[%s1 + $0xfc] sm:$0xf]
    %v158 = vld [vmem:[%s2] sm:$0x1]
    %v160 = vlaneseq
    %v161 = vshrl.u32 %v160, 7
    %v162 = vsub.s32 0, %v161
    %v163 = vrot.slane %v158, %v162
    %v197 = vunpack.c.l.b16 %v62
    %v198 = vunpack.c.h.b16 %v62
    %v199 = vunpack.c.l.b16 %v63
    %v200 = vunpack.c.h.b16 %v63
    %v201 = vunpack.c.l.b16 %v64
    %v202 = vunpack.c.h.b16 %v64
    %v203 = vunpack.c.l.b16 %v65
    %v204 = vunpack.c.h.b16 %v65
    %v205 = vunpack.c.l.b16 %v66
    %v206 = vunpack.c.h.b16 %v66
    %v207 = vunpack.c.l.b16 %v67
    %v208 = vunpack.c.h.b16 %v67
    %v209 = vunpack.c.l.b16 %v68
    %v210 = vunpack.c.h.b16 %v68
    %v211 = vunpack.c.l.b16 %v69
    %v212 = vunpack.c.h.b16 %v69
    %v213 = vunpack.c.l.b16 %v70
    %v214 = vunpack.c.h.b16 %v70
    %v215 = vunpack.c.l.b16 %v71
    %v216 = vunpack.c.h.b16 %v71
    %v217 = vunpack.c.l.b16 %v72
    %v218 = vunpack.c.h.b16 %v72
    %v219 = vunpack.c.l.b16 %v73
    %v220 = vunpack.c.h.b16 %v73
    %v221 = vunpack.c.l.b16 %v74
    %v222 = vunpack.c.h.b16 %v74
    %v223 = vunpack.c.l.b16 %v75
    %v224 = vunpack.c.h.b16 %v75
    %v225 = vunpack.c.l.b16 %v76
    %v226 = vunpack.c.h.b16 %v76
    %v227 = vunpack.c.l.b16 %v77
    %v228 = vunpack.c.h.b16 %v77
    %v229 = vunpack.c.l.b16 %v78
    %v230 = vunpack.c.h.b16 %v78
    %v231 = vunpack.c.l.b16 %v79
    %v232 = vunpack.c.h.b16 %v79
    %v233 = vunpack.c.l.b16 %v80
    %v234 = vunpack.c.h.b16 %v80
    %v235 = vunpack.c.l.b16 %v81
    %v236 = vunpack.c.h.b16 %v81
    %v237 = vunpack.c.l.b16 %v82
    %v238 = vunpack.c.h.b16 %v82
    %v239 = vunpack.c.l.b16 %v83
    %v240 = vunpack.c.h.b16 %v83
    %v241 = vunpack.c.l.b16 %v84
    %v242 = vunpack.c.h.b16 %v84
    %v243 = vunpack.c.l.b16 %v85
    %v244 = vunpack.c.h.b16 %v85
    %v245 = vunpack.c.l.b16 %v86
    %v246 = vunpack.c.h.b16 %v86
    %v247 = vunpack.c.l.b16 %v87
    %v248 = vunpack.c.h.b16 %v87
    %v249 = vunpack.c.l.b16 %v88
    %v250 = vunpack.c.h.b16 %v88
    %v251 = vunpack.c.l.b16 %v89
    %v252 = vunpack.c.h.b16 %v89
    %v253 = vunpack.c.l.b16 %v90
    %v254 = vunpack.c.h.b16 %v90
    %v255 = vunpack.c.l.b16 %v91
    %v256 = vunpack.c.h.b16 %v91
    %v257 = vunpack.c.l.b16 %v92
    %v258 = vunpack.c.h.b16 %v92
    %v259 = vunpack.c.l.b16 %v93
    %v260 = vunpack.c.h.b16 %v93
    %v261 = vpack.c.b16 %v201, %v197
    %v262 = vpack.c.b16 %v202, %v198
    %v263 = vpack.c.b16 %v203, %v199
    %v264 = vpack.c.b16 %v204, %v200
    %v265 = vpack.c.b16 %v209, %v205
    %v266 = vpack.c.b16 %v210, %v206
    %v267 = vpack.c.b16 %v211, %v207
    %v268 = vpack.c.b16 %v212, %v208
    %v269 = vpack.c.b16 %v217, %v213
    %v270 = vpack.c.b16 %v218, %v214
    %v271 = vpack.c.b16 %v219, %v215
    %v272 = vpack.c.b16 %v220, %v216
    %v273 = vpack.c.b16 %v225, %v221
    %v274 = vpack.c.b16 %v226, %v222
    %v275 = vpack.c.b16 %v227, %v223
    %v276 = vpack.c.b16 %v228, %v224
    %v277 = vpack.c.b16 %v233, %v229
    %v278 = vpack.c.b16 %v234, %v230
    %v279 = vpack.c.b16 %v235, %v231
    %v280 = vpack.c.b16 %v236, %v232
    %v281 = vpack.c.b16 %v241, %v237
    %v282 = vpack.c.b16 %v242, %v238
    %v283 = vpack.c.b16 %v243, %v239
    %v284 = vpack.c.b16 %v244, %v240
    %v285 = vpack.c.b16 %v249, %v245
    %v286 = vpack.c.b16 %v250, %v246
    %v287 = vpack.c.b16 %v251, %v247
    %v288 = vpack.c.b16 %v252, %v248
    %v289 = vpack.c.b16 %v257, %v253
    %v290 = vpack.c.b16 %v258, %v254
    %v291 = vpack.c.b16 %v259, %v255
    %v292 = vpack.c.b16 %v260, %v256
    %v389 = vunpack.c.l.b16 %v94
    %v390 = vunpack.c.l.b16 %v95
    %v391 = vunpack.c.l.b16 %v96
    %v392 = vunpack.c.l.b16 %v97
    %v393 = vunpack.c.l.b16 %v98
    %v394 = vunpack.c.l.b16 %v99
    %v395 = vunpack.c.l.b16 %v100
    %v396 = vunpack.c.l.b16 %v101
    %v397 = vunpack.c.l.b16 %v102
    %v398 = vunpack.c.l.b16 %v103
    %v399 = vunpack.c.l.b16 %v104
    %v400 = vunpack.c.l.b16 %v105
    %v401 = vunpack.c.l.b16 %v106
    %v402 = vunpack.c.l.b16 %v107
    %v403 = vunpack.c.l.b16 %v108
    %v404 = vunpack.c.l.b16 %v109
    %v405 = vunpack.c.l.b16 %v110
    %v406 = vunpack.c.l.b16 %v111
    %v407 = vunpack.c.l.b16 %v112
    %v408 = vunpack.c.l.b16 %v113
    %v409 = vunpack.c.l.b16 %v114
    %v410 = vunpack.c.l.b16 %v115
    %v411 = vunpack.c.l.b16 %v116
    %v412 = vunpack.c.l.b16 %v117
    %v413 = vunpack.c.l.b16 %v118
    %v414 = vunpack.c.l.b16 %v119
    %v415 = vunpack.c.l.b16 %v120
    %v416 = vunpack.c.l.b16 %v121
    %v417 = vunpack.c.l.b16 %v122
    %v418 = vunpack.c.l.b16 %v123
    %v419 = vunpack.c.l.b16 %v124
    %v420 = vunpack.c.l.b16 %v125
    %v421 = vunpack.c.l.b16 %v126
    %v422 = vunpack.c.l.b16 %v127
    %v423 = vunpack.c.l.b16 %v128
    %v424 = vunpack.c.l.b16 %v129
    %v425 = vunpack.c.l.b16 %v130
    %v426 = vunpack.c.l.b16 %v131
    %v427 = vunpack.c.l.b16 %v132
    %v428 = vunpack.c.l.b16 %v133
    %v429 = vunpack.c.l.b16 %v134
    %v430 = vunpack.c.l.b16 %v135
    %v431 = vunpack.c.l.b16 %v136
    %v432 = vunpack.c.l.b16 %v137
    %v433 = vunpack.c.l.b16 %v138
    %v434 = vunpack.c.l.b16 %v139
    %v435 = vunpack.c.l.b16 %v140
    %v436 = vunpack.c.l.b16 %v141
    %v437 = vunpack.c.l.b16 %v142
    %v438 = vunpack.c.l.b16 %v143
    %v439 = vunpack.c.l.b16 %v144
    %v440 = vunpack.c.l.b16 %v145
    %v441 = vunpack.c.l.b16 %v146
    %v442 = vunpack.c.l.b16 %v147
    %v443 = vunpack.c.l.b16 %v148
    %v444 = vunpack.c.l.b16 %v149
    %v445 = vunpack.c.l.b16 %v150
    %v446 = vunpack.c.l.b16 %v151
    %v447 = vunpack.c.l.b16 %v152
    %v448 = vunpack.c.l.b16 %v153
    %v449 = vunpack.c.l.b16 %v154
    %v450 = vunpack.c.l.b16 %v155
    %v451 = vunpack.c.l.b16 %v156
    %v452 = vunpack.c.l.b16 %v157
    %v453 = vpack.c.b16 %v390, %v389
    %v454 = vpack.c.b16 %v392, %v391
    %v455 = vpack.c.b16 %v394, %v393
    %v456 = vpack.c.b16 %v396, %v395
    %v457 = vpack.c.b16 %v398, %v397
    %v458 = vpack.c.b16 %v400, %v399
    %v459 = vpack.c.b16 %v402, %v401
    %v460 = vpack.c.b16 %v404, %v403
    %v461 = vpack.c.b16 %v406, %v405
    %v462 = vpack.c.b16 %v408, %v407
    %v463 = vpack.c.b16 %v410, %v409
    %v464 = vpack.c.b16 %v412, %v411
    %v465 = vpack.c.b16 %v414, %v413
    %v466 = vpack.c.b16 %v416, %v415
    %v467 = vpack.c.b16 %v418, %v417
    %v468 = vpack.c.b16 %v420, %v419
    %v469 = vpack.c.b16 %v422, %v421
    %v470 = vpack.c.b16 %v424, %v423
    %v471 = vpack.c.b16 %v426, %v425
    %v472 = vpack.c.b16 %v428, %v427
    %v473 = vpack.c.b16 %v430, %v429
    %v474 = vpack.c.b16 %v432, %v431
    %v475 = vpack.c.b16 %v434, %v433
    %v476 = vpack.c.b16 %v436, %v435
    %v477 = vpack.c.b16 %v438, %v437
    %v478 = vpack.c.b16 %v440, %v439
    %v479 = vpack.c.b16 %v442, %v441
    %v480 = vpack.c.b16 %v444, %v443
    %v481 = vpack.c.b16 %v446, %v445
    %v482 = vpack.c.b16 %v448, %v447
    %v483 = vpack.c.b16 %v450, %v449
    %v484 = vpack.c.b16 %v452, %v451
    %517 = vmatprep.subr.bf16.mxu0 0
    %518 = vmatpush1.bf16.msra.mxu0 %v453
    %519 = vmatprep.subr.bf16.mxu0 0
    %520 = vmatpush1.bf16.msra.mxu0 %v454
    %521 = vmatprep.subr.bf16.mxu0 0
    %522 = vmatpush1.bf16.msra.mxu0 %v455
    %523 = vmatprep.subr.bf16.mxu0 0
    %524 = vmatpush1.bf16.msra.mxu0 %v456
    %525 = vmatprep.subr.bf16.mxu0 0
    %526 = vmatpush1.bf16.msra.mxu0 %v457
    %527 = vmatprep.subr.bf16.mxu0 0
    %528 = vmatpush1.bf16.msra.mxu0 %v458
    %529 = vmatprep.subr.bf16.mxu0 0
    %530 = vmatpush1.bf16.msra.mxu0 %v459
    %531 = vmatprep.subr.bf16.mxu0 0
    %532 = vmatpush1.bf16.msra.mxu0 %v460
    %533 = vmatprep.subr.bf16.mxu0 0
    %534 = vmatpush1.bf16.msra.mxu0 %v461
    %535 = vmatprep.subr.bf16.mxu0 0
    %536 = vmatpush1.bf16.msra.mxu0 %v462
    %537 = vmatprep.subr.bf16.mxu0 0
    %538 = vmatpush1.bf16.msra.mxu0 %v463
    %539 = vmatprep.subr.bf16.mxu0 0
    %540 = vmatpush1.bf16.msra.mxu0 %v464
    %541 = vmatprep.subr.bf16.mxu0 0
    %542 = vmatpush1.bf16.msra.mxu0 %v465
    %543 = vmatprep.subr.bf16.mxu0 0
    %544 = vmatpush1.bf16.msra.mxu0 %v466
    %545 = vmatprep.subr.bf16.mxu0 0
    %546 = vmatpush1.bf16.msra.mxu0 %v467
    %547 = vmatprep.subr.bf16.mxu0 0
    %548 = vmatpush1.bf16.msra.mxu0 %v468
    %549 = vmatprep.mubr.bf16.mxu0 %v262
    %550 = vmatmul.mubr.bf16.gmra.mrb[0].mxu0 %v261
    %v551 = vpop.f32.mrb[0].mxu0
    %v552 = vadd.f32 %v163, %v551
    %v553 = vpop.f32.mrb[0].mxu0
    %v554 = vpop.f32.mrb[0].mxu0
    %v555 = vadd.f32 %v163, %v554
    %v556 = vpop.f32.mrb[0].mxu0
    %557 = vmatprep.mubr.bf16.mxu0 %v266
    %558 = vmatmul.mubr.bf16.gmra.mrb[0].mxu0 %v265
    %v559 = vpop.f32.mrb[0].mxu0
    %v560 = vadd.f32 %v163, %v559
    %v561 = vpop.f32.mrb[0].mxu0
    %v562 = vpop.f32.mrb[0].mxu0
    %v563 = vadd.f32 %v163, %v562
    %v564 = vpop.f32.mrb[0].mxu0
    %565 = vmatprep.mubr.bf16.mxu0 %v270
    %566 = vmatmul.mubr.bf16.gmra.mrb[0].mxu0 %v269
    %v567 = vpop.f32.mrb[0].mxu0
    %v568 = vadd.f32 %v163, %v567
    %v569 = vpop.f32.mrb[0].mxu0
    %v570 = vpop.f32.mrb[0].mxu0
    %v571 = vadd.f32 %v163, %v570
    %v572 = vpop.f32.mrb[0].mxu0
    %573 = vmatprep.mubr.bf16.mxu0 %v274
    %574 = vmatmul.mubr.bf16.gmra.mrb[0].mxu0 %v273
    %v575 = vpop.f32.mrb[0].mxu0
    %v576 = vadd.f32 %v163, %v575
    %v577 = vpop.f32.mrb[0].mxu0
    %v578 = vpop.f32.mrb[0].mxu0
    %v579 = vadd.f32 %v163, %v578
    %v580 = vpop.f32.mrb[0].mxu0
    %581 = vmatprep.mubr.bf16.mxu0 %v278
    %582 = vmatmul.mubr.bf16.gmra.mrb[0].mxu0 %v277
    %v583 = vpop.f32.mrb[0].mxu0
    %v584 = vadd.f32 %v163, %v583
    %v585 = vpop.f32.mrb[0].mxu0
    %v586 = vpop.f32.mrb[0].mxu0
    %v587 = vadd.f32 %v163, %v586
    %v588 = vpop.f32.mrb[0].mxu0
    %589 = vmatprep.mubr.bf16.mxu0 %v282
    %590 = vmatmul.mubr.bf16.gmra.mrb[0].mxu0 %v281
    %v591 = vpop.f32.mrb[0].mxu0
    %v592 = vadd.f32 %v163, %v591
    %v593 = vpop.f32.mrb[0].mxu0
    %v594 = vpop.f32.mrb[0].mxu0
    %v595 = vadd.f32 %v163, %v594
    %v596 = vpop.f32.mrb[0].mxu0
    %597 = vmatprep.mubr.bf16.mxu0 %v286
    %598 = vmatmul.mubr.bf16.gmra.mrb[0].mxu0 %v285
    %v599 = vpop.f32.mrb[0].mxu0
    %v600 = vadd.f32 %v163, %v599
    %v601 = vpop.f32.mrb[0].mxu0
    %v602 = vpop.f32.mrb[0].mxu0
    %v603 = vadd.f32 %v163, %v602
    %v604 = vpop.f32.mrb[0].mxu0
    %605 = vmatprep.mubr.bf16.mxu0 %v290
    %606 = vmatmul.mubr.bf16.gmra.mrb[0].mxu0 %v289
    %v607 = vpop.f32.mrb[0].mxu0
    %v608 = vadd.f32 %v163, %v607
    %v609 = vpop.f32.mrb[0].mxu0
    %v610 = vpop.f32.mrb[0].mxu0
    %v611 = vadd.f32 %v163, %v610
    %v612 = vpop.f32.mrb[0].mxu0
    %613 = vdwg.mxu0
    %614 = vmatprep.subr.bf16.mxu0 0
    %615 = vmatpush1.bf16.msra.mxu0 %v469
    %616 = vmatprep.subr.bf16.mxu0 0
    %617 = vmatpush1.bf16.msra.mxu0 %v470
    %618 = vmatprep.subr.bf16.mxu0 0
    %619 = vmatpush1.bf16.msra.mxu0 %v471
    %620 = vmatprep.subr.bf16.mxu0 0
    %621 = vmatpush1.bf16.msra.mxu0 %v472
    %622 = vmatprep.subr.bf16.mxu0 0
    %623 = vmatpush1.bf16.msra.mxu0 %v473
    %624 = vmatprep.subr.bf16.mxu0 0
    %625 = vmatpush1.bf16.msra.mxu0 %v474
    %626 = vmatprep.subr.bf16.mxu0 0
    %627 = vmatpush1.bf16.msra.mxu0 %v475
    %628 = vmatprep.subr.bf16.mxu0 0
    %629 = vmatpush1.bf16.msra.mxu0 %v476
    %630 = vmatprep.subr.bf16.mxu0 0
    %631 = vmatpush1.bf16.msra.mxu0 %v477
    %632 = vmatprep.subr.bf16.mxu0 0
    %633 = vmatpush1.bf16.msra.mxu0 %v478
    %634 = vmatprep.subr.bf16.mxu0 0
    %635 = vmatpush1.bf16.msra.mxu0 %v479
    %636 = vmatprep.subr.bf16.mxu0 0
    %637 = vmatpush1.bf16.msra.mxu0 %v480
    %638 = vmatprep.subr.bf16.mxu0 0
    %639 = vmatpush1.bf16.msra.mxu0 %v481
    %640 = vmatprep.subr.bf16.mxu0 0
    %641 = vmatpush1.bf16.msra.mxu0 %v482
    %642 = vmatprep.subr.bf16.mxu0 0
    %643 = vmatpush1.bf16.msra.mxu0 %v483
    %644 = vmatprep.subr.bf16.mxu0 0
    %645 = vmatpush1.bf16.msra.mxu0 %v484
    %646 = vmatprep.mubr.bf16.mxu0 %v264
    %647 = vmatmul.mubr.bf16.gmra.mrb[0].mxu0 %v263
    %v648 = vpop.f32.mrb[0].mxu0
    %v649 = vadd.f32 %v552, %v648
    %v650 = vpop.f32.mrb[0].mxu0
    %v651 = vpop.f32.mrb[0].mxu0
    %v652 = vadd.f32 %v555, %v651
    %v653 = vpop.f32.mrb[0].mxu0
    %654 = vmatprep.mubr.bf16.mxu0 %v268
    %655 = vmatmul.mubr.bf16.gmra.mrb[0].mxu0 %v267
    %v656 = vpop.f32.mrb[0].mxu0
    %v657 = vadd.f32 %v560, %v656
    %v658 = vpop.f32.mrb[0].mxu0
    %v659 = vpop.f32.mrb[0].mxu0
    %v660 = vadd.f32 %v563, %v659
    %v661 = vpop.f32.mrb[0].mxu0
    %662 = vmatprep.mubr.bf16.mxu0 %v272
    %663 = vmatmul.mubr.bf16.gmra.mrb[0].mxu0 %v271
    %v664 = vpop.f32.mrb[0].mxu0
    %v665 = vadd.f32 %v568, %v664
    %v666 = vpop.f32.mrb[0].mxu0
    %v667 = vpop.f32.mrb[0].mxu0
    %v668 = vadd.f32 %v571, %v667
    %v669 = vpop.f32.mrb[0].mxu0
    %670 = vmatprep.mubr.bf16.mxu0 %v276
    %671 = vmatmul.mubr.bf16.gmra.mrb[0].mxu0 %v275
    %v672 = vpop.f32.mrb[0].mxu0
    %v673 = vadd.f32 %v576, %v672
    %v674 = vpop.f32.mrb[0].mxu0
    %v675 = vpop.f32.mrb[0].mxu0
    %v676 = vadd.f32 %v579, %v675
    %v677 = vpop.f32.mrb[0].mxu0
    %678 = vmatprep.mubr.bf16.mxu0 %v280
    %679 = vmatmul.mubr.bf16.gmra.mrb[0].mxu0 %v279
    %v680 = vpop.f32.mrb[0].mxu0
    %v681 = vadd.f32 %v584, %v680
    %v682 = vpop.f32.mrb[0].mxu0
    %v683 = vpop.f32.mrb[0].mxu0
    %v684 = vadd.f32 %v587, %v683
    %v685 = vpop.f32.mrb[0].mxu0
    %686 = vmatprep.mubr.bf16.mxu0 %v284
    %687 = vmatmul.mubr.bf16.gmra.mrb[0].mxu0 %v283
    %v688 = vpop.f32.mrb[0].mxu0
    %v689 = vadd.f32 %v592, %v688
    %v690 = vpop.f32.mrb[0].mxu0
    %v691 = vpop.f32.mrb[0].mxu0
    %v692 = vadd.f32 %v595, %v691
    %v693 = vpop.f32.mrb[0].mxu0
    %694 = vmatprep.mubr.bf16.mxu0 %v288
    %695 = vmatmul.mubr.bf16.gmra.mrb[0].mxu0 %v287
    %v696 = vpop.f32.mrb[0].mxu0
    %v697 = vadd.f32 %v600, %v696
    %v698 = vpop.f32.mrb[0].mxu0
    %v699 = vpop.f32.mrb[0].mxu0
    %v700 = vadd.f32 %v603, %v699
    %v701 = vpop.f32.mrb[0].mxu0
    %702 = vmatprep.mubr.bf16.mxu0 %v292
    %703 = vmatmul.mubr.bf16.gmra.mrb[0].mxu0 %v291
    %v704 = vpop.f32.mrb[0].mxu0
    %v705 = vadd.f32 %v608, %v704
    %v706 = vpop.f32.mrb[0].mxu0
    %v707 = vpop.f32.mrb[0].mxu0
    %v708 = vadd.f32 %v611, %v707
    %v709 = vpop.f32.mrb[0].mxu0
    %710 = vdwg.mxu0
    %v711 = vmax.f32 %v649, 0.0
    %v712 = vmax.f32 %v652, 0.0
    %v713 = vmax.f32 %v657, 0.0
    %v714 = vmax.f32 %v660, 0.0
    %v715 = vmax.f32 %v665, 0.0
    %v716 = vmax.f32 %v668, 0.0
    %v717 = vmax.f32 %v673, 0.0
    %v718 = vmax.f32 %v676, 0.0
    %v719 = vmax.f32 %v681, 0.0
    %v720 = vmax.f32 %v684, 0.0
    %v721 = vmax.f32 %v689, 0.0
    %v722 = vmax.f32 %v692, 0.0
    %v723 = vmax.f32 %v697, 0.0
    %v724 = vmax.f32 %v700, 0.0
    %v725 = vmax.f32 %v705, 0.0
    %v726 = vmax.f32 %v708, 0.0
    %v727 = vpack.c.bf16 %v712, %v711
    %v728 = vpack.c.bf16 %v714, %v713
    %v729 = vpack.c.bf16 %v716, %v715
    %v730 = vpack.c.bf16 %v718, %v717
    %v731 = vpack.c.bf16 %v720, %v719
    %v732 = vpack.c.bf16 %v722, %v721
    %v733 = vpack.c.bf16 %v724, %v723
    %v734 = vpack.c.bf16 %v726, %v725
    %v735 = vld [vmem:[%s3] sm:$0xf]
    %v736 = vld [vmem:[%s3 + $0x10] sm:$0xf]
    %v737 = vld [vmem:[%s3 + $0x20] sm:$0xf]
    %v738 = vld [vmem:[%s3 + $0x30] sm:$0xf]
    %v739 = vld [vmem:[%s3 + $0x40] sm:$0xf]
    %v740 = vld [vmem:[%s3 + $0x50] sm:$0xf]
    %v741 = vld [vmem:[%s3 + $0x60] sm:$0xf]
    %v742 = vld [vmem:[%s3 + $0x70] sm:$0xf]
    %v743 = vld [vmem:[%s4] sm:$0x1]
    %v745 = vlaneseq
    %v746 = vshrl.u32 %v745, 7
    %v747 = vsub.s32 0, %v746
    %v748 = vrot.slane %v743, %v747
    %v758 = vunpack.c.l.b16 %v735
    %v759 = vunpack.c.l.b16 %v736
    %v760 = vunpack.c.l.b16 %v737
    %v761 = vunpack.c.l.b16 %v738
    %v762 = vunpack.c.l.b16 %v739
    %v763 = vunpack.c.l.b16 %v740
    %v764 = vunpack.c.l.b16 %v741
    %v765 = vunpack.c.l.b16 %v742
    %v766 = vpack.c.b16 %v759, %v758
    %v767 = vpack.c.b16 %v761, %v760
    %v768 = vpack.c.b16 %v763, %v762
    %v769 = vpack.c.b16 %v765, %v764
    %vm774 = vcmask 523264
    %v776 = vsel %vm774, %v727, 0
    %v779 = vsel %vm774, %v728, 0
    %v782 = vsel %vm774, %v729, 0
    %v785 = vsel %vm774, %v730, 0
    %v788 = vsel %vm774, %v731, 0
    %v791 = vsel %vm774, %v732, 0
    %v794 = vsel %vm774, %v733, 0
    %v797 = vsel %vm774, %v734, 0
    %799 = vmatprep.subr.bf16.mxu0 0
    %800 = vmatpush1.bf16.msra.mxu0 %v766
    %801 = vmatprep.subr.bf16.mxu0 0
    %802 = vmatpush1.bf16.msra.mxu0 %v767
    %803 = vmatprep.subr.bf16.mxu0 0
    %804 = vmatpush1.bf16.msra.mxu0 %v768
    %805 = vmatprep.subr.bf16.mxu0 0
    %806 = vmatpush1.bf16.msra.mxu0 %v769
    %807 = vmatprep.subr.bf16.mxu0 0
    %808 = vmatpush1.bf16.msra.mxu0 0
    %809 = vmatprep.subr.bf16.mxu0 0
    %810 = vmatpush1.bf16.msra.mxu0 0
    %811 = vmatprep.subr.bf16.mxu0 0
    %812 = vmatpush1.bf16.msra.mxu0 0
    %813 = vmatprep.subr.bf16.mxu0 0
    %814 = vmatpush1.bf16.msra.mxu0 0
    %815 = vmatprep.subr.bf16.mxu0 0
    %816 = vmatpush1.bf16.msra.mxu0 0
    %817 = vmatprep.subr.bf16.mxu0 0
    %818 = vmatpush1.bf16.msra.mxu0 0
    %819 = vmatprep.subr.bf16.mxu0 0
    %820 = vmatpush1.bf16.msra.mxu0 0
    %821 = vmatprep.subr.bf16.mxu0 0
    %822 = vmatpush1.bf16.msra.mxu0 0
    %823 = vmatprep.subr.bf16.mxu0 0
    %824 = vmatpush1.bf16.msra.mxu0 0
    %825 = vmatprep.subr.bf16.mxu0 0
    %826 = vmatpush1.bf16.msra.mxu0 0
    %827 = vmatprep.subr.bf16.mxu0 0
    %828 = vmatpush1.bf16.msra.mxu0 0
    %829 = vmatprep.subr.bf16.mxu0 0
    %830 = vmatpush1.bf16.msra.mxu0 0
    %831 = vmatprep.mubr.bf16.mxu0 0
    %832 = vmatmul.mubr.bf16.gmra.mrb[0].mxu0 %v776
    %v833 = vpop.f32.mrb[0].mxu0
    %v834 = vadd.f32 %v748, %v833
    %v835 = vpop.f32.mrb[0].mxu0
    %v836 = vpop.f32.mrb[0].mxu0
    %v837 = vadd.f32 %v748, %v836
    %v838 = vpop.f32.mrb[0].mxu0
    %839 = vmatprep.mubr.bf16.mxu0 0
    %840 = vmatmul.mubr.bf16.gmra.mrb[0].mxu0 %v779
    %v841 = vpop.f32.mrb[0].mxu0
    %v842 = vadd.f32 %v748, %v841
    %v843 = vpop.f32.mrb[0].mxu0
    %v844 = vpop.f32.mrb[0].mxu0
    %v845 = vadd.f32 %v748, %v844
    %v846 = vpop.f32.mrb[0].mxu0
    %847 = vmatprep.mubr.bf16.mxu0 0
    %848 = vmatmul.mubr.bf16.gmra.mrb[0].mxu0 %v782
    %v849 = vpop.f32.mrb[0].mxu0
    %v850 = vadd.f32 %v748, %v849
    %v851 = vpop.f32.mrb[0].mxu0
    %v852 = vpop.f32.mrb[0].mxu0
    %v853 = vadd.f32 %v748, %v852
    %v854 = vpop.f32.mrb[0].mxu0
    %855 = vmatprep.mubr.bf16.mxu0 0
    %856 = vmatmul.mubr.bf16.gmra.mrb[0].mxu0 %v785
    %v857 = vpop.f32.mrb[0].mxu0
    %v858 = vadd.f32 %v748, %v857
    %v859 = vpop.f32.mrb[0].mxu0
    %v860 = vpop.f32.mrb[0].mxu0
    %v861 = vadd.f32 %v748, %v860
    %v862 = vpop.f32.mrb[0].mxu0
    %863 = vmatprep.mubr.bf16.mxu0 0
    %864 = vmatmul.mubr.bf16.gmra.mrb[0].mxu0 %v788
    %v865 = vpop.f32.mrb[0].mxu0
    %v866 = vadd.f32 %v748, %v865
    %v867 = vpop.f32.mrb[0].mxu0
    %v868 = vpop.f32.mrb[0].mxu0
    %v869 = vadd.f32 %v748, %v868
    %v870 = vpop.f32.mrb[0].mxu0
    %871 = vmatprep.mubr.bf16.mxu0 0
    %872 = vmatmul.mubr.bf16.gmra.mrb[0].mxu0 %v791
    %v873 = vpop.f32.mrb[0].mxu0
    %v874 = vadd.f32 %v748, %v873
    %v875 = vpop.f32.mrb[0].mxu0
    %v876 = vpop.f32.mrb[0].mxu0
    %v877 = vadd.f32 %v748, %v876
    %v878 = vpop.f32.mrb[0].mxu0
    %879 = vmatprep.mubr.bf16.mxu0 0
    %880 = vmatmul.mubr.bf16.gmra.mrb[0].mxu0 %v794
    %v881 = vpop.f32.mrb[0].mxu0
    %v882 = vadd.f32 %v748, %v881
    %v883 = vpop.f32.mrb[0].mxu0
    %v884 = vpop.f32.mrb[0].mxu0
    %v885 = vadd.f32 %v748, %v884
    %v886 = vpop.f32.mrb[0].mxu0
    %887 = vmatprep.mubr.bf16.mxu0 0
    %888 = vmatmul.mubr.bf16.gmra.mrb[0].mxu0 %v797
    %v889 = vpop.f32.mrb[0].mxu0
    %v890 = vadd.f32 %v748, %v889
    %v891 = vpop.f32.mrb[0].mxu0
    %v892 = vpop.f32.mrb[0].mxu0
    %v893 = vadd.f32 %v748, %v892
    %v894 = vpop.f32.mrb[0].mxu0
    %895 = vdwg.mxu0
    %v896 = vxor.u32 %v834, 2147483648
    %v897 = vxor.u32 %v837, 2147483648
    %v898 = vxor.u32 %v842, 2147483648
    %v899 = vxor.u32 %v845, 2147483648
    %v900 = vxor.u32 %v850, 2147483648
    %v901 = vxor.u32 %v853, 2147483648
    %v902 = vxor.u32 %v858, 2147483648
    %v903 = vxor.u32 %v861, 2147483648
    %v904 = vxor.u32 %v866, 2147483648
    %v905 = vxor.u32 %v869, 2147483648
    %v906 = vxor.u32 %v874, 2147483648
    %v907 = vxor.u32 %v877, 2147483648
    %v908 = vxor.u32 %v882, 2147483648
    %v909 = vxor.u32 %v885, 2147483648
    %v910 = vxor.u32 %v890, 2147483648
    %v911 = vxor.u32 %v893, 2147483648
    %v912 = vmul.f32 %v896, 1.442695
    %v913 = vpow.pop %v912
    %v914 = vmul.f32 %v897, 1.442695
    %v915 = vpow.pop %v914
    %v916 = vmul.f32 %v898, 1.442695
    %v917 = vpow.pop %v916
    %v918 = vmul.f32 %v899, 1.442695
    %v919 = vpow.pop %v918
    %v920 = vmul.f32 %v900, 1.442695
    %v921 = vpow.pop %v920
    %v922 = vmul.f32 %v901, 1.442695
    %v923 = vpow.pop %v922
    %v924 = vmul.f32 %v902, 1.442695
    %v925 = vpow.pop %v924
    %v926 = vmul.f32 %v903, 1.442695
    %v927 = vpow.pop %v926
    %v928 = vmul.f32 %v904, 1.442695
    %v929 = vpow.pop %v928
    %v930 = vmul.f32 %v905, 1.442695
    %v931 = vpow.pop %v930
    %v932 = vmul.f32 %v906, 1.442695
    %v933 = vpow.pop %v932
    %v934 = vmul.f32 %v907, 1.442695
    %v935 = vpow.pop %v934
    %v936 = vmul.f32 %v908, 1.442695
    %v937 = vpow.pop %v936
    %v938 = vmul.f32 %v909, 1.442695
    %v939 = vpow.pop %v938
    %v940 = vmul.f32 %v910, 1.442695
    %v941 = vpow.pop %v940
    %v942 = vmul.f32 %v911, 1.442695
    %v943 = vpow.pop %v942
    %v944 = vadd.f32 %v913, 1.0
    %v945 = vadd.f32 %v915, 1.0
    %v946 = vadd.f32 %v917, 1.0
    %v947 = vadd.f32 %v919, 1.0
    %v948 = vadd.f32 %v921, 1.0
    %v949 = vadd.f32 %v923, 1.0
    %v950 = vadd.f32 %v925, 1.0
    %v951 = vadd.f32 %v927, 1.0
    %v952 = vadd.f32 %v929, 1.0
    %v953 = vadd.f32 %v931, 1.0
    %v954 = vadd.f32 %v933, 1.0
    %v955 = vadd.f32 %v935, 1.0
    %v956 = vadd.f32 %v937, 1.0
    %v957 = vadd.f32 %v939, 1.0
    %v958 = vadd.f32 %v941, 1.0
    %v959 = vadd.f32 %v943, 1.0
    %v960 = vrcp.pop %v944
    %v961 = vmul.f32 1.0, %v960
    %v962 = vrcp.pop %v945
    %v963 = vmul.f32 1.0, %v962
    %v964 = vrcp.pop %v946
    %v965 = vmul.f32 1.0, %v964
    %v966 = vrcp.pop %v947
    %v967 = vmul.f32 1.0, %v966
    %v968 = vrcp.pop %v948
    %v969 = vmul.f32 1.0, %v968
    %v970 = vrcp.pop %v949
    %v971 = vmul.f32 1.0, %v970
    %v972 = vrcp.pop %v950
    %v973 = vmul.f32 1.0, %v972
    %v974 = vrcp.pop %v951
    %v975 = vmul.f32 1.0, %v974
    %v976 = vrcp.pop %v952
    %v977 = vmul.f32 1.0, %v976
    %v978 = vrcp.pop %v953
    %v979 = vmul.f32 1.0, %v978
    %v980 = vrcp.pop %v954
    %v981 = vmul.f32 1.0, %v980
    %v982 = vrcp.pop %v955
    %v983 = vmul.f32 1.0, %v982
    %v984 = vrcp.pop %v956
    %v985 = vmul.f32 1.0, %v984
    %v986 = vrcp.pop %v957
    %v987 = vmul.f32 1.0, %v986
    %v988 = vrcp.pop %v958
    %v989 = vmul.f32 1.0, %v988
    %v990 = vrcp.pop %v959
    %v991 = vmul.f32 1.0, %v990
    %v992 = vunpack.c.l.bf16 %v62
    %v993 = vunpack.c.l.bf16 %v64
    %v994 = vunpack.c.l.bf16 %v66
    %v995 = vunpack.c.l.bf16 %v68
    %v996 = vunpack.c.l.bf16 %v70
    %v997 = vunpack.c.l.bf16 %v72
    %v998 = vunpack.c.l.bf16 %v74
    %v999 = vunpack.c.l.bf16 %v76
    %v1000 = vunpack.c.l.bf16 %v78
    %v1001 = vunpack.c.l.bf16 %v80
    %v1002 = vunpack.c.l.bf16 %v82
    %v1003 = vunpack.c.l.bf16 %v84
    %v1004 = vunpack.c.l.bf16 %v86
    %v1005 = vunpack.c.l.bf16 %v88
    %v1006 = vunpack.c.l.bf16 %v90
    %v1007 = vunpack.c.l.bf16 %v92
    %v1008 = vmul.f32 %v992, %v961
    %v1009 = vmul.f32 %v993, %v963
    %v1010 = vmul.f32 %v994, %v965
    %v1011 = vmul.f32 %v995, %v967
    %v1012 = vmul.f32 %v996, %v969
    %v1013 = vmul.f32 %v997, %v971
    %v1014 = vmul.f32 %v998, %v973
    %v1015 = vmul.f32 %v999, %v975
    %v1016 = vmul.f32 %v1000, %v977
    %v1017 = vmul.f32 %v1001, %v979
    %v1018 = vmul.f32 %v1002, %v981
    %v1019 = vmul.f32 %v1003, %v983
    %v1020 = vmul.f32 %v1004, %v985
    %v1021 = vmul.f32 %v1005, %v987
    %v1022 = vmul.f32 %v1006, %v989
    %v1023 = vmul.f32 %v1007, %v991
    %v1024 = vadd.f32 %v1008, %v1009
    %v1025 = vadd.f32 %v1024, %v1010
    %v1026 = vadd.f32 %v1025, %v1011
    %v1027 = vadd.f32 %v1026, %v1012
    %v1028 = vadd.f32 %v1027, %v1013
    %v1029 = vadd.f32 %v1028, %v1014
    %v1030 = vadd.f32 %v1029, %v1015
    %v1031 = vrot.slane %v1030, 4
    %v1032 = vadd.f32 %v1030, %v1031
    %v1033 = vrot.slane %v1032, 2
    %v1034 = vadd.f32 %v1032, %v1033
    %v1035 = vrot.slane %v1034, 1
    %v1036 = vadd.f32 %v1034, %v1035
    %v1037 = vadd.f32 %v1016, %v1017
    %v1038 = vadd.f32 %v1037, %v1018
    %v1039 = vadd.f32 %v1038, %v1019
    %v1040 = vadd.f32 %v1039, %v1020
    %v1041 = vadd.f32 %v1040, %v1021
    %v1042 = vadd.f32 %v1041, %v1022
    %v1043 = vadd.f32 %v1042, %v1023
    %v1044 = vrot.slane %v1043, 4
    %v1045 = vadd.f32 %v1043, %v1044
    %v1046 = vrot.slane %v1045, 2
    %v1047 = vadd.f32 %v1045, %v1046
    %v1048 = vrot.slane %v1047, 1
    %v1049 = vadd.f32 %v1047, %v1048
    %v1050 = vrcp.pop 64.0
    %v1051 = vmul.f32 %v1036, %v1050
    %v1052 = vmul.f32 %v1049, %v1050
    %v1053 = vld [vmem:[%s3 + $0x4] sm:$0xf]
    %v1054 = vld [vmem:[%s3 + $0x14] sm:$0xf]
    %v1055 = vld [vmem:[%s3 + $0x24] sm:$0xf]
    %v1056 = vld [vmem:[%s3 + $0x34] sm:$0xf]
    %v1057 = vld [vmem:[%s3 + $0x44] sm:$0xf]
    %v1058 = vld [vmem:[%s3 + $0x54] sm:$0xf]
    %v1059 = vld [vmem:[%s3 + $0x64] sm:$0xf]
    %v1060 = vld [vmem:[%s3 + $0x74] sm:$0xf]
    %v1061 = vld [vmem:[%s4 + $0x1] sm:$0x1]
    %v1063 = vlaneseq
    %v1064 = vshrl.u32 %v1063, 7
    %v1065 = vsub.s32 0, %v1064
    %v1066 = vrot.slane %v1061, %v1065
    %v1076 = vunpack.c.l.b16 %v1053
    %v1077 = vunpack.c.l.b16 %v1054
    %v1078 = vunpack.c.l.b16 %v1055
    %v1079 = vunpack.c.l.b16 %v1056
    %v1080 = vunpack.c.l.b16 %v1057
    %v1081 = vunpack.c.l.b16 %v1058
    %v1082 = vunpack.c.l.b16 %v1059
    %v1083 = vunpack.c.l.b16 %v1060
    %v1084 = vpack.c.b16 %v1077, %v1076
    %v1085 = vpack.c.b16 %v1079, %v1078
    %v1086 = vpack.c.b16 %v1081, %v1080
    %v1087 = vpack.c.b16 %v1083, %v1082
    %1092 = vmatprep.subr.bf16.mxu0 0
    %1093 = vmatpush1.bf16.msra.mxu0 %v1084
    %1094 = vmatprep.subr.bf16.mxu0 0
    %1095 = vmatpush1.bf16.msra.mxu0 %v1085
    %1096 = vmatprep.subr.bf16.mxu0 0
    %1097 = vmatpush1.bf16.msra.mxu0 %v1086
    %1098 = vmatprep.subr.bf16.mxu0 0
    %1099 = vmatpush1.bf16.msra.mxu0 %v1087
    %1100 = vmatprep.subr.bf16.mxu0 0
    %1101 = vmatpush1.bf16.msra.mxu0 0
    %1102 = vmatprep.subr.bf16.mxu0 0
    %1103 = vmatpush1.bf16.msra.mxu0 0
    %1104 = vmatprep.subr.bf16.mxu0 0
    %1105 = vmatpush1.bf16.msra.mxu0 0
    %1106 = vmatprep.subr.bf16.mxu0 0
    %1107 = vmatpush1.bf16.msra.mxu0 0
    %1108 = vmatprep.subr.bf16.mxu0 0
    %1109 = vmatpush1.bf16.msra.mxu0 0
    %1110 = vmatprep.subr.bf16.mxu0 0
    %1111 = vmatpush1.bf16.msra.mxu0 0
    %1112 = vmatprep.subr.bf16.mxu0 0
    %1113 = vmatpush1.bf16.msra.mxu0 0
    %1114 = vmatprep.subr.bf16.mxu0 0
    %1115 = vmatpush1.bf16.msra.mxu0 0
    %1116 = vmatprep.subr.bf16.mxu0 0
    %1117 = vmatpush1.bf16.msra.mxu0 0
    %1118 = vmatprep.subr.bf16.mxu0 0
    %1119 = vmatpush1.bf16.msra.mxu0 0
    %1120 = vmatprep.subr.bf16.mxu0 0
    %1121 = vmatpush1.bf16.msra.mxu0 0
    %1122 = vmatprep.subr.bf16.mxu0 0
    %1123 = vmatpush1.bf16.msra.mxu0 0
    %1124 = vmatprep.mubr.bf16.mxu0 0
    %1125 = vmatmul.mubr.bf16.gmra.mrb[0].mxu0 %v776
    %v1126 = vpop.f32.mrb[0].mxu0
    %v1127 = vadd.f32 %v1066, %v1126
    %v1128 = vpop.f32.mrb[0].mxu0
    %v1129 = vpop.f32.mrb[0].mxu0
    %v1130 = vadd.f32 %v1066, %v1129
    %v1131 = vpop.f32.mrb[0].mxu0
    %1132 = vmatprep.mubr.bf16.mxu0 0
    %1133 = vmatmul.mubr.bf16.gmra.mrb[0].mxu0 %v779
    %v1134 = vpop.f32.mrb[0].mxu0
    %v1135 = vadd.f32 %v1066, %v1134
    %v1136 = vpop.f32.mrb[0].mxu0
    %v1137 = vpop.f32.mrb[0].mxu0
    %v1138 = vadd.f32 %v1066, %v1137
    %v1139 = vpop.f32.mrb[0].mxu0
    %1140 = vmatprep.mubr.bf16.mxu0 0
    %1141 = vmatmul.mubr.bf16.gmra.mrb[0].mxu0 %v782
    %v1142 = vpop.f32.mrb[0].mxu0
    %v1143 = vadd.f32 %v1066, %v1142
    %v1144 = vpop.f32.mrb[0].mxu0
    %v1145 = vpop.f32.mrb[0].mxu0
    %v1146 = vadd.f32 %v1066, %v1145
    %v1147 = vpop.f32.mrb[0].mxu0
    %1148 = vmatprep.mubr.bf16.mxu0 0
    %1149 = vmatmul.mubr.bf16.gmra.mrb[0].mxu0 %v785
    %v1150 = vpop.f32.mrb[0].mxu0
    %v1151 = vadd.f32 %v1066, %v1150
    %v1152 = vpop.f32.mrb[0].mxu0
    %v1153 = vpop.f32.mrb[0].mxu0
    %v1154 = vadd.f32 %v1066, %v1153
    %v1155 = vpop.f32.mrb[0].mxu0
    %1156 = vmatprep.mubr.bf16.mxu0 0
    %1157 = vmatmul.mubr.bf16.gmra.mrb[0].mxu0 %v788
    %v1158 = vpop.f32.mrb[0].mxu0
    %v1159 = vadd.f32 %v1066, %v1158
    %v1160 = vpop.f32.mrb[0].mxu0
    %v1161 = vpop.f32.mrb[0].mxu0
    %v1162 = vadd.f32 %v1066, %v1161
    %v1163 = vpop.f32.mrb[0].mxu0
    %1164 = vmatprep.mubr.bf16.mxu0 0
    %1165 = vmatmul.mubr.bf16.gmra.mrb[0].mxu0 %v791
    %v1166 = vpop.f32.mrb[0].mxu0
    %v1167 = vadd.f32 %v1066, %v1166
    %v1168 = vpop.f32.mrb[0].mxu0
    %v1169 = vpop.f32.mrb[0].mxu0
    %v1170 = vadd.f32 %v1066, %v1169
    %v1171 = vpop.f32.mrb[0].mxu0
    %1172 = vmatprep.mubr.bf16.mxu0 0
    %1173 = vmatmul.mubr.bf16.gmra.mrb[0].mxu0 %v794
    %v1174 = vpop.f32.mrb[0].mxu0
    %v1175 = vadd.f32 %v1066, %v1174
    %v1176 = vpop.f32.mrb[0].mxu0
    %v1177 = vpop.f32.mrb[0].mxu0
    %v1178 = vadd.f32 %v1066, %v1177
    %v1179 = vpop.f32.mrb[0].mxu0
    %1180 = vmatprep.mubr.bf16.mxu0 0
    %1181 = vmatmul.mubr.bf16.gmra.mrb[0].mxu0 %v797
    %v1182 = vpop.f32.mrb[0].mxu0
    %v1183 = vadd.f32 %v1066, %v1182
    %v1184 = vpop.f32.mrb[0].mxu0
    %v1185 = vpop.f32.mrb[0].mxu0
    %v1186 = vadd.f32 %v1066, %v1185
    %v1187 = vpop.f32.mrb[0].mxu0
    %1188 = vdwg.mxu0
    %v1189 = vxor.u32 %v1127, 2147483648
    %v1190 = vxor.u32 %v1130, 2147483648
    %v1191 = vxor.u32 %v1135, 2147483648
    %v1192 = vxor.u32 %v1138, 2147483648
    %v1193 = vxor.u32 %v1143, 2147483648
    %v1194 = vxor.u32 %v1146, 2147483648
    %v1195 = vxor.u32 %v1151, 2147483648
    %v1196 = vxor.u32 %v1154, 2147483648
    %v1197 = vxor.u32 %v1159, 2147483648
    %v1198 = vxor.u32 %v1162, 2147483648
    %v1199 = vxor.u32 %v1167, 2147483648
    %v1200 = vxor.u32 %v1170, 2147483648
    %v1201 = vxor.u32 %v1175, 2147483648
    %v1202 = vxor.u32 %v1178, 2147483648
    %v1203 = vxor.u32 %v1183, 2147483648
    %v1204 = vxor.u32 %v1186, 2147483648
    %v1205 = vmul.f32 %v1189, 1.442695
    %v1206 = vpow.pop %v1205
    %v1207 = vmul.f32 %v1190, 1.442695
    %v1208 = vpow.pop %v1207
    %v1209 = vmul.f32 %v1191, 1.442695
    %v1210 = vpow.pop %v1209
    %v1211 = vmul.f32 %v1192, 1.442695
    %v1212 = vpow.pop %v1211
    %v1213 = vmul.f32 %v1193, 1.442695
    %v1214 = vpow.pop %v1213
    %v1215 = vmul.f32 %v1194, 1.442695
    %v1216 = vpow.pop %v1215
    %v1217 = vmul.f32 %v1195, 1.442695
    %v1218 = vpow.pop %v1217
    %v1219 = vmul.f32 %v1196, 1.442695
    %v1220 = vpow.pop %v1219
    %v1221 = vmul.f32 %v1197, 1.442695
    %v1222 = vpow.pop %v1221
    %v1223 = vmul.f32 %v1198, 1.442695
    %v1224 = vpow.pop %v1223
    %v1225 = vmul.f32 %v1199, 1.442695
    %v1226 = vpow.pop %v1225
    %v1227 = vmul.f32 %v1200, 1.442695
    %v1228 = vpow.pop %v1227
    %v1229 = vmul.f32 %v1201, 1.442695
    %v1230 = vpow.pop %v1229
    %v1231 = vmul.f32 %v1202, 1.442695
    %v1232 = vpow.pop %v1231
    %v1233 = vmul.f32 %v1203, 1.442695
    %v1234 = vpow.pop %v1233
    %v1235 = vmul.f32 %v1204, 1.442695
    %v1236 = vpow.pop %v1235
    %v1237 = vadd.f32 %v1206, 1.0
    %v1238 = vadd.f32 %v1208, 1.0
    %v1239 = vadd.f32 %v1210, 1.0
    %v1240 = vadd.f32 %v1212, 1.0
    %v1241 = vadd.f32 %v1214, 1.0
    %v1242 = vadd.f32 %v1216, 1.0
    %v1243 = vadd.f32 %v1218, 1.0
    %v1244 = vadd.f32 %v1220, 1.0
    %v1245 = vadd.f32 %v1222, 1.0
    %v1246 = vadd.f32 %v1224, 1.0
    %v1247 = vadd.f32 %v1226, 1.0
    %v1248 = vadd.f32 %v1228, 1.0
    %v1249 = vadd.f32 %v1230, 1.0
    %v1250 = vadd.f32 %v1232, 1.0
    %v1251 = vadd.f32 %v1234, 1.0
    %v1252 = vadd.f32 %v1236, 1.0
    %v1253 = vrcp.pop %v1237
    %v1254 = vmul.f32 1.0, %v1253
    %v1255 = vrcp.pop %v1238
    %v1256 = vmul.f32 1.0, %v1255
    %v1257 = vrcp.pop %v1239
    %v1258 = vmul.f32 1.0, %v1257
    %v1259 = vrcp.pop %v1240
    %v1260 = vmul.f32 1.0, %v1259
    %v1261 = vrcp.pop %v1241
    %v1262 = vmul.f32 1.0, %v1261
    %v1263 = vrcp.pop %v1242
    %v1264 = vmul.f32 1.0, %v1263
    %v1265 = vrcp.pop %v1243
    %v1266 = vmul.f32 1.0, %v1265
    %v1267 = vrcp.pop %v1244
    %v1268 = vmul.f32 1.0, %v1267
    %v1269 = vrcp.pop %v1245
    %v1270 = vmul.f32 1.0, %v1269
    %v1271 = vrcp.pop %v1246
    %v1272 = vmul.f32 1.0, %v1271
    %v1273 = vrcp.pop %v1247
    %v1274 = vmul.f32 1.0, %v1273
    %v1275 = vrcp.pop %v1248
    %v1276 = vmul.f32 1.0, %v1275
    %v1277 = vrcp.pop %v1249
    %v1278 = vmul.f32 1.0, %v1277
    %v1279 = vrcp.pop %v1250
    %v1280 = vmul.f32 1.0, %v1279
    %v1281 = vrcp.pop %v1251
    %v1282 = vmul.f32 1.0, %v1281
    %v1283 = vrcp.pop %v1252
    %v1284 = vmul.f32 1.0, %v1283
    %v1285 = vrot.slane %v62, 4
    %v1286 = vrot.slane %v64, 4
    %v1287 = vrot.slane %v66, 4
    %v1288 = vrot.slane %v68, 4
    %v1289 = vrot.slane %v70, 4
    %v1290 = vrot.slane %v72, 4
    %v1291 = vrot.slane %v74, 4
    %v1292 = vrot.slane %v76, 4
    %v1293 = vrot.slane %v78, 4
    %v1294 = vrot.slane %v80, 4
    %v1295 = vrot.slane %v82, 4
    %v1296 = vrot.slane %v84, 4
    %v1297 = vrot.slane %v86, 4
    %v1298 = vrot.slane %v88, 4
    %v1299 = vrot.slane %v90, 4
    %v1300 = vrot.slane %v92, 4
    %v1317 = vunpack.c.l.bf16 %v1285
    %v1318 = vunpack.c.l.bf16 %v1286
    %v1319 = vunpack.c.l.bf16 %v1287
    %v1320 = vunpack.c.l.bf16 %v1288
    %v1321 = vunpack.c.l.bf16 %v1289
    %v1322 = vunpack.c.l.bf16 %v1290
    %v1323 = vunpack.c.l.bf16 %v1291
    %v1324 = vunpack.c.l.bf16 %v1292
    %v1325 = vunpack.c.l.bf16 %v1293
    %v1326 = vunpack.c.l.bf16 %v1294
    %v1327 = vunpack.c.l.bf16 %v1295
    %v1328 = vunpack.c.l.bf16 %v1296
    %v1329 = vunpack.c.l.bf16 %v1297
    %v1330 = vunpack.c.l.bf16 %v1298
    %v1331 = vunpack.c.l.bf16 %v1299
    %v1332 = vunpack.c.l.bf16 %v1300
    %v1333 = vmul.f32 %v1317, %v1254
    %v1334 = vmul.f32 %v1318, %v1256
    %v1335 = vmul.f32 %v1319, %v1258
    %v1336 = vmul.f32 %v1320, %v1260
    %v1337 = vmul.f32 %v1321, %v1262
    %v1338 = vmul.f32 %v1322, %v1264
    %v1339 = vmul.f32 %v1323, %v1266
    %v1340 = vmul.f32 %v1324, %v1268
    %v1341 = vmul.f32 %v1325, %v1270
    %v1342 = vmul.f32 %v1326, %v1272
    %v1343 = vmul.f32 %v1327, %v1274
    %v1344 = vmul.f32 %v1328, %v1276
    %v1345 = vmul.f32 %v1329, %v1278
    %v1346 = vmul.f32 %v1330, %v1280
    %v1347 = vmul.f32 %v1331, %v1282
    %v1348 = vmul.f32 %v1332, %v1284
    %v1349 = vadd.f32 %v1333, %v1334
    %v1350 = vadd.f32 %v1349, %v1335
    %v1351 = vadd.f32 %v1350, %v1336
    %v1352 = vadd.f32 %v1351, %v1337
    %v1353 = vadd.f32 %v1352, %v1338
    %v1354 = vadd.f32 %v1353, %v1339
    %v1355 = vadd.f32 %v1354, %v1340
    %v1356 = vrot.slane %v1355, 4
    %v1357 = vadd.f32 %v1355, %v1356
    %v1358 = vrot.slane %v1357, 2
    %v1359 = vadd.f32 %v1357, %v1358
    %v1360 = vrot.slane %v1359, 1
    %v1361 = vadd.f32 %v1359, %v1360
    %v1362 = vadd.f32 %v1341, %v1342
    %v1363 = vadd.f32 %v1362, %v1343
    %v1364 = vadd.f32 %v1363, %v1344
    %v1365 = vadd.f32 %v1364, %v1345
    %v1366 = vadd.f32 %v1365, %v1346
    %v1367 = vadd.f32 %v1366, %v1347
    %v1368 = vadd.f32 %v1367, %v1348
    %v1369 = vrot.slane %v1368, 4
    %v1370 = vadd.f32 %v1368, %v1369
    %v1371 = vrot.slane %v1370, 2
    %v1372 = vadd.f32 %v1370, %v1371
    %v1373 = vrot.slane %v1372, 1
    %v1374 = vadd.f32 %v1372, %v1373
    %v1375 = vmul.f32 %v1361, %v1050
    %v1376 = vmul.f32 %v1374, %v1050
    %v1377 = vld [vmem:[%s3 + $0x8] sm:$0xf]
    %v1378 = vld [vmem:[%s3 + $0x18] sm:$0xf]
    %v1379 = vld [vmem:[%s3 + $0x28] sm:$0xf]
    %v1380 = vld [vmem:[%s3 + $0x38] sm:$0xf]
    %v1381 = vld [vmem:[%s3 + $0x48] sm:$0xf]
    %v1382 = vld [vmem:[%s3 + $0x58] sm:$0xf]
    %v1383 = vld [vmem:[%s3 + $0x68] sm:$0xf]
    %v1384 = vld [vmem:[%s3 + $0x78] sm:$0xf]
    %v1385 = vld [vmem:[%s4 + $0x2] sm:$0x1]
    %v1387 = vlaneseq
    %v1388 = vshrl.u32 %v1387, 7
    %v1389 = vsub.s32 0, %v1388
    %v1390 = vrot.slane %v1385, %v1389
    %v1400 = vunpack.c.l.b16 %v1377
    %v1401 = vunpack.c.l.b16 %v1378
    %v1402 = vunpack.c.l.b16 %v1379
    %v1403 = vunpack.c.l.b16 %v1380
    %v1404 = vunpack.c.l.b16 %v1381
    %v1405 = vunpack.c.l.b16 %v1382
    %v1406 = vunpack.c.l.b16 %v1383
    %v1407 = vunpack.c.l.b16 %v1384
    %v1408 = vpack.c.b16 %v1401, %v1400
    %v1409 = vpack.c.b16 %v1403, %v1402
    %v1410 = vpack.c.b16 %v1405, %v1404
    %v1411 = vpack.c.b16 %v1407, %v1406
    %1416 = vmatprep.subr.bf16.mxu0 0
    %1417 = vmatpush1.bf16.msra.mxu0 %v1408
    %1418 = vmatprep.subr.bf16.mxu0 0
    %1419 = vmatpush1.bf16.msra.mxu0 %v1409
    %1420 = vmatprep.subr.bf16.mxu0 0
    %1421 = vmatpush1.bf16.msra.mxu0 %v1410
    %1422 = vmatprep.subr.bf16.mxu0 0
    %1423 = vmatpush1.bf16.msra.mxu0 %v1411
    %1424 = vmatprep.subr.bf16.mxu0 0
    %1425 = vmatpush1.bf16.msra.mxu0 0
    %1426 = vmatprep.subr.bf16.mxu0 0
    %1427 = vmatpush1.bf16.msra.mxu0 0
    %1428 = vmatprep.subr.bf16.mxu0 0
    %1429 = vmatpush1.bf16.msra.mxu0 0
    %1430 = vmatprep.subr.bf16.mxu0 0
    %1431 = vmatpush1.bf16.msra.mxu0 0
    %1432 = vmatprep.subr.bf16.mxu0 0
    %1433 = vmatpush1.bf16.msra.mxu0 0
    %1434 = vmatprep.subr.bf16.mxu0 0
    %1435 = vmatpush1.bf16.msra.mxu0 0
    %1436 = vmatprep.subr.bf16.mxu0 0
    %1437 = vmatpush1.bf16.msra.mxu0 0
    %1438 = vmatprep.subr.bf16.mxu0 0
    %1439 = vmatpush1.bf16.msra.mxu0 0
    %1440 = vmatprep.subr.bf16.mxu0 0
    %1441 = vmatpush1.bf16.msra.mxu0 0
    %1442 = vmatprep.subr.bf16.mxu0 0
    %1443 = vmatpush1.bf16.msra.mxu0 0
    %1444 = vmatprep.subr.bf16.mxu0 0
    %1445 = vmatpush1.bf16.msra.mxu0 0
    %1446 = vmatprep.subr.bf16.mxu0 0
    %1447 = vmatpush1.bf16.msra.mxu0 0
    %1448 = vmatprep.mubr.bf16.mxu0 0
    %1449 = vmatmul.mubr.bf16.gmra.mrb[0].mxu0 %v776
    %v1450 = vpop.f32.mrb[0].mxu0
    %v1451 = vadd.f32 %v1390, %v1450
    %v1452 = vpop.f32.mrb[0].mxu0
    %v1453 = vpop.f32.mrb[0].mxu0
    %v1454 = vadd.f32 %v1390, %v1453
    %v1455 = vpop.f32.mrb[0].mxu0
    %1456 = vmatprep.mubr.bf16.mxu0 0
    %1457 = vmatmul.mubr.bf16.gmra.mrb[0].mxu0 %v779
    %v1458 = vpop.f32.mrb[0].mxu0
    %v1459 = vadd.f32 %v1390, %v1458
    %v1460 = vpop.f32.mrb[0].mxu0
    %v1461 = vpop.f32.mrb[0].mxu0
    %v1462 = vadd.f32 %v1390, %v1461
    %v1463 = vpop.f32.mrb[0].mxu0
    %1464 = vmatprep.mubr.bf16.mxu0 0
    %1465 = vmatmul.mubr.bf16.gmra.mrb[0].mxu0 %v782
    %v1466 = vpop.f32.mrb[0].mxu0
    %v1467 = vadd.f32 %v1390, %v1466
    %v1468 = vpop.f32.mrb[0].mxu0
    %v1469 = vpop.f32.mrb[0].mxu0
    %v1470 = vadd.f32 %v1390, %v1469
    %v1471 = vpop.f32.mrb[0].mxu0
    %1472 = vmatprep.mubr.bf16.mxu0 0
    %1473 = vmatmul.mubr.bf16.gmra.mrb[0].mxu0 %v785
    %v1474 = vpop.f32.mrb[0].mxu0
    %v1475 = vadd.f32 %v1390, %v1474
    %v1476 = vpop.f32.mrb[0].mxu0
    %v1477 = vpop.f32.mrb[0].mxu0
    %v1478 = vadd.f32 %v1390, %v1477
    %v1479 = vpop.f32.mrb[0].mxu0
    %1480 = vmatprep.mubr.bf16.mxu0 0
    %1481 = vmatmul.mubr.bf16.gmra.mrb[0].mxu0 %v788
    %v1482 = vpop.f32.mrb[0].mxu0
    %v1483 = vadd.f32 %v1390, %v1482
    %v1484 = vpop.f32.mrb[0].mxu0
    %v1485 = vpop.f32.mrb[0].mxu0
    %v1486 = vadd.f32 %v1390, %v1485
    %v1487 = vpop.f32.mrb[0].mxu0
    %1488 = vmatprep.mubr.bf16.mxu0 0
    %1489 = vmatmul.mubr.bf16.gmra.mrb[0].mxu0 %v791
    %v1490 = vpop.f32.mrb[0].mxu0
    %v1491 = vadd.f32 %v1390, %v1490
    %v1492 = vpop.f32.mrb[0].mxu0
    %v1493 = vpop.f32.mrb[0].mxu0
    %v1494 = vadd.f32 %v1390, %v1493
    %v1495 = vpop.f32.mrb[0].mxu0
    %1496 = vmatprep.mubr.bf16.mxu0 0
    %1497 = vmatmul.mubr.bf16.gmra.mrb[0].mxu0 %v794
    %v1498 = vpop.f32.mrb[0].mxu0
    %v1499 = vadd.f32 %v1390, %v1498
    %v1500 = vpop.f32.mrb[0].mxu0
    %v1501 = vpop.f32.mrb[0].mxu0
    %v1502 = vadd.f32 %v1390, %v1501
    %v1503 = vpop.f32.mrb[0].mxu0
    %1504 = vmatprep.mubr.bf16.mxu0 0
    %1505 = vmatmul.mubr.bf16.gmra.mrb[0].mxu0 %v797
    %v1506 = vpop.f32.mrb[0].mxu0
    %v1507 = vadd.f32 %v1390, %v1506
    %v1508 = vpop.f32.mrb[0].mxu0
    %v1509 = vpop.f32.mrb[0].mxu0
    %v1510 = vadd.f32 %v1390, %v1509
    %v1511 = vpop.f32.mrb[0].mxu0
    %1512 = vdwg.mxu0
    %v1513 = vxor.u32 %v1451, 2147483648
    %v1514 = vxor.u32 %v1454, 2147483648
    %v1515 = vxor.u32 %v1459, 2147483648
    %v1516 = vxor.u32 %v1462, 2147483648
    %v1517 = vxor.u32 %v1467, 2147483648
    %v1518 = vxor.u32 %v1470, 2147483648
    %v1519 = vxor.u32 %v1475, 2147483648
    %v1520 = vxor.u32 %v1478, 2147483648
    %v1521 = vxor.u32 %v1483, 2147483648
    %v1522 = vxor.u32 %v1486, 2147483648
    %v1523 = vxor.u32 %v1491, 2147483648
    %v1524 = vxor.u32 %v1494, 2147483648
    %v1525 = vxor.u32 %v1499, 2147483648
    %v1526 = vxor.u32 %v1502, 2147483648
    %v1527 = vxor.u32 %v1507, 2147483648
    %v1528 = vxor.u32 %v1510, 2147483648
    %v1529 = vmul.f32 %v1513, 1.442695
    %v1530 = vpow.pop %v1529
    %v1531 = vmul.f32 %v1514, 1.442695
    %v1532 = vpow.pop %v1531
    %v1533 = vmul.f32 %v1515, 1.442695
    %v1534 = vpow.pop %v1533
    %v1535 = vmul.f32 %v1516, 1.442695
    %v1536 = vpow.pop %v1535
    %v1537 = vmul.f32 %v1517, 1.442695
    %v1538 = vpow.pop %v1537
    %v1539 = vmul.f32 %v1518, 1.442695
    %v1540 = vpow.pop %v1539
    %v1541 = vmul.f32 %v1519, 1.442695
    %v1542 = vpow.pop %v1541
    %v1543 = vmul.f32 %v1520, 1.442695
    %v1544 = vpow.pop %v1543
    %v1545 = vmul.f32 %v1521, 1.442695
    %v1546 = vpow.pop %v1545
    %v1547 = vmul.f32 %v1522, 1.442695
    %v1548 = vpow.pop %v1547
    %v1549 = vmul.f32 %v1523, 1.442695
    %v1550 = vpow.pop %v1549
    %v1551 = vmul.f32 %v1524, 1.442695
    %v1552 = vpow.pop %v1551
    %v1553 = vmul.f32 %v1525, 1.442695
    %v1554 = vpow.pop %v1553
    %v1555 = vmul.f32 %v1526, 1.442695
    %v1556 = vpow.pop %v1555
    %v1557 = vmul.f32 %v1527, 1.442695
    %v1558 = vpow.pop %v1557
    %v1559 = vmul.f32 %v1528, 1.442695
    %v1560 = vpow.pop %v1559
    %v1561 = vadd.f32 %v1530, 1.0
    %v1562 = vadd.f32 %v1532, 1.0
    %v1563 = vadd.f32 %v1534, 1.0
    %v1564 = vadd.f32 %v1536, 1.0
    %v1565 = vadd.f32 %v1538, 1.0
    %v1566 = vadd.f32 %v1540, 1.0
    %v1567 = vadd.f32 %v1542, 1.0
    %v1568 = vadd.f32 %v1544, 1.0
    %v1569 = vadd.f32 %v1546, 1.0
    %v1570 = vadd.f32 %v1548, 1.0
    %v1571 = vadd.f32 %v1550, 1.0
    %v1572 = vadd.f32 %v1552, 1.0
    %v1573 = vadd.f32 %v1554, 1.0
    %v1574 = vadd.f32 %v1556, 1.0
    %v1575 = vadd.f32 %v1558, 1.0
    %v1576 = vadd.f32 %v1560, 1.0
    %v1577 = vrcp.pop %v1561
    %v1578 = vmul.f32 1.0, %v1577
    %v1579 = vrcp.pop %v1562
    %v1580 = vmul.f32 1.0, %v1579
    %v1581 = vrcp.pop %v1563
    %v1582 = vmul.f32 1.0, %v1581
    %v1583 = vrcp.pop %v1564
    %v1584 = vmul.f32 1.0, %v1583
    %v1585 = vrcp.pop %v1565
    %v1586 = vmul.f32 1.0, %v1585
    %v1587 = vrcp.pop %v1566
    %v1588 = vmul.f32 1.0, %v1587
    %v1589 = vrcp.pop %v1567
    %v1590 = vmul.f32 1.0, %v1589
    %v1591 = vrcp.pop %v1568
    %v1592 = vmul.f32 1.0, %v1591
    %v1593 = vrcp.pop %v1569
    %v1594 = vmul.f32 1.0, %v1593
    %v1595 = vrcp.pop %v1570
    %v1596 = vmul.f32 1.0, %v1595
    %v1597 = vrcp.pop %v1571
    %v1598 = vmul.f32 1.0, %v1597
    %v1599 = vrcp.pop %v1572
    %v1600 = vmul.f32 1.0, %v1599
    %v1601 = vrcp.pop %v1573
    %v1602 = vmul.f32 1.0, %v1601
    %v1603 = vrcp.pop %v1574
    %v1604 = vmul.f32 1.0, %v1603
    %v1605 = vrcp.pop %v1575
    %v1606 = vmul.f32 1.0, %v1605
    %v1607 = vrcp.pop %v1576
    %v1608 = vmul.f32 1.0, %v1607
    %v1609 = vunpack.c.l.bf16 %v63
    %v1610 = vunpack.c.l.bf16 %v65
    %v1611 = vunpack.c.l.bf16 %v67
    %v1612 = vunpack.c.l.bf16 %v69
    %v1613 = vunpack.c.l.bf16 %v71
    %v1614 = vunpack.c.l.bf16 %v73
    %v1615 = vunpack.c.l.bf16 %v75
    %v1616 = vunpack.c.l.bf16 %v77
    %v1617 = vunpack.c.l.bf16 %v79
    %v1618 = vunpack.c.l.bf16 %v81
    %v1619 = vunpack.c.l.bf16 %v83
    %v1620 = vunpack.c.l.bf16 %v85
    %v1621 = vunpack.c.l.bf16 %v87
    %v1622 = vunpack.c.l.bf16 %v89
    %v1623 = vunpack.c.l.bf16 %v91
    %v1624 = vunpack.c.l.bf16 %v93
    %v1625 = vmul.f32 %v1609, %v1578
    %v1626 = vmul.f32 %v1610, %v1580
    %v1627 = vmul.f32 %v1611, %v1582
    %v1628 = vmul.f32 %v1612, %v1584
    %v1629 = vmul.f32 %v1613, %v1586
    %v1630 = vmul.f32 %v1614, %v1588
    %v1631 = vmul.f32 %v1615, %v1590
    %v1632 = vmul.f32 %v1616, %v1592
    %v1633 = vmul.f32 %v1617, %v1594
    %v1634 = vmul.f32 %v1618, %v1596
    %v1635 = vmul.f32 %v1619, %v1598
    %v1636 = vmul.f32 %v1620, %v1600
    %v1637 = vmul.f32 %v1621, %v1602
    %v1638 = vmul.f32 %v1622, %v1604
    %v1639 = vmul.f32 %v1623, %v1606
    %v1640 = vmul.f32 %v1624, %v1608
    %v1641 = vadd.f32 %v1625, %v1626
    %v1642 = vadd.f32 %v1641, %v1627
    %v1643 = vadd.f32 %v1642, %v1628
    %v1644 = vadd.f32 %v1643, %v1629
    %v1645 = vadd.f32 %v1644, %v1630
    %v1646 = vadd.f32 %v1645, %v1631
    %v1647 = vadd.f32 %v1646, %v1632
    %v1648 = vrot.slane %v1647, 4
    %v1649 = vadd.f32 %v1647, %v1648
    %v1650 = vrot.slane %v1649, 2
    %v1651 = vadd.f32 %v1649, %v1650
    %v1652 = vrot.slane %v1651, 1
    %v1653 = vadd.f32 %v1651, %v1652
    %v1654 = vadd.f32 %v1633, %v1634
    %v1655 = vadd.f32 %v1654, %v1635
    %v1656 = vadd.f32 %v1655, %v1636
    %v1657 = vadd.f32 %v1656, %v1637
    %v1658 = vadd.f32 %v1657, %v1638
    %v1659 = vadd.f32 %v1658, %v1639
    %v1660 = vadd.f32 %v1659, %v1640
    %v1661 = vrot.slane %v1660, 4
    %v1662 = vadd.f32 %v1660, %v1661
    %v1663 = vrot.slane %v1662, 2
    %v1664 = vadd.f32 %v1662, %v1663
    %v1665 = vrot.slane %v1664, 1
    %v1666 = vadd.f32 %v1664, %v1665
    %v1667 = vmul.f32 %v1653, %v1050
    %v1668 = vmul.f32 %v1666, %v1050
    %v1669 = vld [vmem:[%s3 + $0xc] sm:$0xf]
    %v1670 = vld [vmem:[%s3 + $0x1c] sm:$0xf]
    %v1671 = vld [vmem:[%s3 + $0x2c] sm:$0xf]
    %v1672 = vld [vmem:[%s3 + $0x3c] sm:$0xf]
    %v1673 = vld [vmem:[%s3 + $0x4c] sm:$0xf]
    %v1674 = vld [vmem:[%s3 + $0x5c] sm:$0xf]
    %v1675 = vld [vmem:[%s3 + $0x6c] sm:$0xf]
    %v1676 = vld [vmem:[%s3 + $0x7c] sm:$0xf]
    %v1677 = vld [vmem:[%s4 + $0x3] sm:$0x1]
    %v1679 = vlaneseq
    %v1680 = vshrl.u32 %v1679, 7
    %v1681 = vsub.s32 0, %v1680
    %v1682 = vrot.slane %v1677, %v1681
    %v1692 = vunpack.c.l.b16 %v1669
    %v1693 = vunpack.c.l.b16 %v1670
    %v1694 = vunpack.c.l.b16 %v1671
    %v1695 = vunpack.c.l.b16 %v1672
    %v1696 = vunpack.c.l.b16 %v1673
    %v1697 = vunpack.c.l.b16 %v1674
    %v1698 = vunpack.c.l.b16 %v1675
    %v1699 = vunpack.c.l.b16 %v1676
    %v1700 = vpack.c.b16 %v1693, %v1692
    %v1701 = vpack.c.b16 %v1695, %v1694
    %v1702 = vpack.c.b16 %v1697, %v1696
    %v1703 = vpack.c.b16 %v1699, %v1698
    %1708 = vmatprep.subr.bf16.mxu0 0
    %1709 = vmatpush1.bf16.msra.mxu0 %v1700
    %1710 = vmatprep.subr.bf16.mxu0 0
    %1711 = vmatpush1.bf16.msra.mxu0 %v1701
    %1712 = vmatprep.subr.bf16.mxu0 0
    %1713 = vmatpush1.bf16.msra.mxu0 %v1702
    %1714 = vmatprep.subr.bf16.mxu0 0
    %1715 = vmatpush1.bf16.msra.mxu0 %v1703
    %1716 = vmatprep.subr.bf16.mxu0 0
    %1717 = vmatpush1.bf16.msra.mxu0 0
    %1718 = vmatprep.subr.bf16.mxu0 0
    %1719 = vmatpush1.bf16.msra.mxu0 0
    %1720 = vmatprep.subr.bf16.mxu0 0
    %1721 = vmatpush1.bf16.msra.mxu0 0
    %1722 = vmatprep.subr.bf16.mxu0 0
    %1723 = vmatpush1.bf16.msra.mxu0 0
    %1724 = vmatprep.subr.bf16.mxu0 0
    %1725 = vmatpush1.bf16.msra.mxu0 0
    %1726 = vmatprep.subr.bf16.mxu0 0
    %1727 = vmatpush1.bf16.msra.mxu0 0
    %1728 = vmatprep.subr.bf16.mxu0 0
    %1729 = vmatpush1.bf16.msra.mxu0 0
    %1730 = vmatprep.subr.bf16.mxu0 0
    %1731 = vmatpush1.bf16.msra.mxu0 0
    %1732 = vmatprep.subr.bf16.mxu0 0
    %1733 = vmatpush1.bf16.msra.mxu0 0
    %1734 = vmatprep.subr.bf16.mxu0 0
    %1735 = vmatpush1.bf16.msra.mxu0 0
    %1736 = vmatprep.subr.bf16.mxu0 0
    %1737 = vmatpush1.bf16.msra.mxu0 0
    %1738 = vmatprep.subr.bf16.mxu0 0
    %1739 = vmatpush1.bf16.msra.mxu0 0
    %1740 = vmatprep.mubr.bf16.mxu0 0
    %1741 = vmatmul.mubr.bf16.gmra.mrb[0].mxu0 %v776
    %v1742 = vpop.f32.mrb[0].mxu0
    %v1743 = vadd.f32 %v1682, %v1742
    %v1744 = vpop.f32.mrb[0].mxu0
    %v1745 = vpop.f32.mrb[0].mxu0
    %v1746 = vadd.f32 %v1682, %v1745
    %v1747 = vpop.f32.mrb[0].mxu0
    %1748 = vmatprep.mubr.bf16.mxu0 0
    %1749 = vmatmul.mubr.bf16.gmra.mrb[0].mxu0 %v779
    %v1750 = vpop.f32.mrb[0].mxu0
    %v1751 = vadd.f32 %v1682, %v1750
    %v1752 = vpop.f32.mrb[0].mxu0
    %v1753 = vpop.f32.mrb[0].mxu0
    %v1754 = vadd.f32 %v1682, %v1753
    %v1755 = vpop.f32.mrb[0].mxu0
    %1756 = vmatprep.mubr.bf16.mxu0 0
    %1757 = vmatmul.mubr.bf16.gmra.mrb[0].mxu0 %v782
    %v1758 = vpop.f32.mrb[0].mxu0
    %v1759 = vadd.f32 %v1682, %v1758
    %v1760 = vpop.f32.mrb[0].mxu0
    %v1761 = vpop.f32.mrb[0].mxu0
    %v1762 = vadd.f32 %v1682, %v1761
    %v1763 = vpop.f32.mrb[0].mxu0
    %1764 = vmatprep.mubr.bf16.mxu0 0
    %1765 = vmatmul.mubr.bf16.gmra.mrb[0].mxu0 %v785
    %v1766 = vpop.f32.mrb[0].mxu0
    %v1767 = vadd.f32 %v1682, %v1766
    %v1768 = vpop.f32.mrb[0].mxu0
    %v1769 = vpop.f32.mrb[0].mxu0
    %v1770 = vadd.f32 %v1682, %v1769
    %v1771 = vpop.f32.mrb[0].mxu0
    %1772 = vmatprep.mubr.bf16.mxu0 0
    %1773 = vmatmul.mubr.bf16.gmra.mrb[0].mxu0 %v788
    %v1774 = vpop.f32.mrb[0].mxu0
    %v1775 = vadd.f32 %v1682, %v1774
    %v1776 = vpop.f32.mrb[0].mxu0
    %v1777 = vpop.f32.mrb[0].mxu0
    %v1778 = vadd.f32 %v1682, %v1777
    %v1779 = vpop.f32.mrb[0].mxu0
    %1780 = vmatprep.mubr.bf16.mxu0 0
    %1781 = vmatmul.mubr.bf16.gmra.mrb[0].mxu0 %v791
    %v1782 = vpop.f32.mrb[0].mxu0
    %v1783 = vadd.f32 %v1682, %v1782
    %v1784 = vpop.f32.mrb[0].mxu0
    %v1785 = vpop.f32.mrb[0].mxu0
    %v1786 = vadd.f32 %v1682, %v1785
    %v1787 = vpop.f32.mrb[0].mxu0
    %1788 = vmatprep.mubr.bf16.mxu0 0
    %1789 = vmatmul.mubr.bf16.gmra.mrb[0].mxu0 %v794
    %v1790 = vpop.f32.mrb[0].mxu0
    %v1791 = vadd.f32 %v1682, %v1790
    %v1792 = vpop.f32.mrb[0].mxu0
    %v1793 = vpop.f32.mrb[0].mxu0
    %v1794 = vadd.f32 %v1682, %v1793
    %v1795 = vpop.f32.mrb[0].mxu0
    %1796 = vmatprep.mubr.bf16.mxu0 0
    %1797 = vmatmul.mubr.bf16.gmra.mrb[0].mxu0 %v797
    %v1798 = vpop.f32.mrb[0].mxu0
    %v1799 = vadd.f32 %v1682, %v1798
    %v1800 = vpop.f32.mrb[0].mxu0
    %v1801 = vpop.f32.mrb[0].mxu0
    %v1802 = vadd.f32 %v1682, %v1801
    %v1803 = vpop.f32.mrb[0].mxu0
    %1804 = vdwg.mxu0
    %v1805 = vxor.u32 %v1743, 2147483648
    %v1806 = vxor.u32 %v1746, 2147483648
    %v1807 = vxor.u32 %v1751, 2147483648
    %v1808 = vxor.u32 %v1754, 2147483648
    %v1809 = vxor.u32 %v1759, 2147483648
    %v1810 = vxor.u32 %v1762, 2147483648
    %v1811 = vxor.u32 %v1767, 2147483648
    %v1812 = vxor.u32 %v1770, 2147483648
    %v1813 = vxor.u32 %v1775, 2147483648
    %v1814 = vxor.u32 %v1778, 2147483648
    %v1815 = vxor.u32 %v1783, 2147483648
    %v1816 = vxor.u32 %v1786, 2147483648
    %v1817 = vxor.u32 %v1791, 2147483648
    %v1818 = vxor.u32 %v1794, 2147483648
    %v1819 = vxor.u32 %v1799, 2147483648
    %v1820 = vxor.u32 %v1802, 2147483648
    %v1821 = vmul.f32 %v1805, 1.442695
    %v1822 = vpow.pop %v1821
    %v1823 = vmul.f32 %v1806, 1.442695
    %v1824 = vpow.pop %v1823
    %v1825 = vmul.f32 %v1807, 1.442695
    %v1826 = vpow.pop %v1825
    %v1827 = vmul.f32 %v1808, 1.442695
    %v1828 = vpow.pop %v1827
    %v1829 = vmul.f32 %v1809, 1.442695
    %v1830 = vpow.pop %v1829
    %v1831 = vmul.f32 %v1810, 1.442695
    %v1832 = vpow.pop %v1831
    %v1833 = vmul.f32 %v1811, 1.442695
    %v1834 = vpow.pop %v1833
    %v1835 = vmul.f32 %v1812, 1.442695
    %v1836 = vpow.pop %v1835
    %v1837 = vmul.f32 %v1813, 1.442695
    %v1838 = vpow.pop %v1837
    %v1839 = vmul.f32 %v1814, 1.442695
    %v1840 = vpow.pop %v1839
    %v1841 = vmul.f32 %v1815, 1.442695
    %v1842 = vpow.pop %v1841
    %v1843 = vmul.f32 %v1816, 1.442695
    %v1844 = vpow.pop %v1843
    %v1845 = vmul.f32 %v1817, 1.442695
    %v1846 = vpow.pop %v1845
    %v1847 = vmul.f32 %v1818, 1.442695
    %v1848 = vpow.pop %v1847
    %v1849 = vmul.f32 %v1819, 1.442695
    %v1850 = vpow.pop %v1849
    %v1851 = vmul.f32 %v1820, 1.442695
    %v1852 = vpow.pop %v1851
    %v1853 = vadd.f32 %v1822, 1.0
    %v1854 = vadd.f32 %v1824, 1.0
    %v1855 = vadd.f32 %v1826, 1.0
    %v1856 = vadd.f32 %v1828, 1.0
    %v1857 = vadd.f32 %v1830, 1.0
    %v1858 = vadd.f32 %v1832, 1.0
    %v1859 = vadd.f32 %v1834, 1.0
    %v1860 = vadd.f32 %v1836, 1.0
    %v1861 = vadd.f32 %v1838, 1.0
    %v1862 = vadd.f32 %v1840, 1.0
    %v1863 = vadd.f32 %v1842, 1.0
    %v1864 = vadd.f32 %v1844, 1.0
    %v1865 = vadd.f32 %v1846, 1.0
    %v1866 = vadd.f32 %v1848, 1.0
    %v1867 = vadd.f32 %v1850, 1.0
    %v1868 = vadd.f32 %v1852, 1.0
    %v1869 = vrcp.pop %v1853
    %v1870 = vmul.f32 1.0, %v1869
    %v1871 = vrcp.pop %v1854
    %v1872 = vmul.f32 1.0, %v1871
    %v1873 = vrcp.pop %v1855
    %v1874 = vmul.f32 1.0, %v1873
    %v1875 = vrcp.pop %v1856
    %v1876 = vmul.f32 1.0, %v1875
    %v1877 = vrcp.pop %v1857
    %v1878 = vmul.f32 1.0, %v1877
    %v1879 = vrcp.pop %v1858
    %v1880 = vmul.f32 1.0, %v1879
    %v1881 = vrcp.pop %v1859
    %v1882 = vmul.f32 1.0, %v1881
    %v1883 = vrcp.pop %v1860
    %v1884 = vmul.f32 1.0, %v1883
    %v1885 = vrcp.pop %v1861
    %v1886 = vmul.f32 1.0, %v1885
    %v1887 = vrcp.pop %v1862
    %v1888 = vmul.f32 1.0, %v1887
    %v1889 = vrcp.pop %v1863
    %v1890 = vmul.f32 1.0, %v1889
    %v1891 = vrcp.pop %v1864
    %v1892 = vmul.f32 1.0, %v1891
    %v1893 = vrcp.pop %v1865
    %v1894 = vmul.f32 1.0, %v1893
    %v1895 = vrcp.pop %v1866
    %v1896 = vmul.f32 1.0, %v1895
    %v1897 = vrcp.pop %v1867
    %v1898 = vmul.f32 1.0, %v1897
    %v1899 = vrcp.pop %v1868
    %v1900 = vmul.f32 1.0, %v1899
    %v1901 = vrot.slane %v63, 4
    %v1902 = vrot.slane %v65, 4
    %v1903 = vrot.slane %v67, 4
    %v1904 = vrot.slane %v69, 4
    %v1905 = vrot.slane %v71, 4
    %v1906 = vrot.slane %v73, 4
    %v1907 = vrot.slane %v75, 4
    %v1908 = vrot.slane %v77, 4
    %v1909 = vrot.slane %v79, 4
    %v1910 = vrot.slane %v81, 4
    %v1911 = vrot.slane %v83, 4
    %v1912 = vrot.slane %v85, 4
    %v1913 = vrot.slane %v87, 4
    %v1914 = vrot.slane %v89, 4
    %v1915 = vrot.slane %v91, 4
    %v1916 = vrot.slane %v93, 4
    %v1933 = vunpack.c.l.bf16 %v1901
    %v1934 = vunpack.c.l.bf16 %v1902
    %v1935 = vunpack.c.l.bf16 %v1903
    %v1936 = vunpack.c.l.bf16 %v1904
    %v1937 = vunpack.c.l.bf16 %v1905
    %v1938 = vunpack.c.l.bf16 %v1906
    %v1939 = vunpack.c.l.bf16 %v1907
    %v1940 = vunpack.c.l.bf16 %v1908
    %v1941 = vunpack.c.l.bf16 %v1909
    %v1942 = vunpack.c.l.bf16 %v1910
    %v1943 = vunpack.c.l.bf16 %v1911
    %v1944 = vunpack.c.l.bf16 %v1912
    %v1945 = vunpack.c.l.bf16 %v1913
    %v1946 = vunpack.c.l.bf16 %v1914
    %v1947 = vunpack.c.l.bf16 %v1915
    %v1948 = vunpack.c.l.bf16 %v1916
    %v1949 = vmul.f32 %v1933, %v1870
    %v1950 = vmul.f32 %v1934, %v1872
    %v1951 = vmul.f32 %v1935, %v1874
    %v1952 = vmul.f32 %v1936, %v1876
    %v1953 = vmul.f32 %v1937, %v1878
    %v1954 = vmul.f32 %v1938, %v1880
    %v1955 = vmul.f32 %v1939, %v1882
    %v1956 = vmul.f32 %v1940, %v1884
    %v1957 = vmul.f32 %v1941, %v1886
    %v1958 = vmul.f32 %v1942, %v1888
    %v1959 = vmul.f32 %v1943, %v1890
    %v1960 = vmul.f32 %v1944, %v1892
    %v1961 = vmul.f32 %v1945, %v1894
    %v1962 = vmul.f32 %v1946, %v1896
    %v1963 = vmul.f32 %v1947, %v1898
    %v1964 = vmul.f32 %v1948, %v1900
    %v1965 = vadd.f32 %v1949, %v1950
    %v1966 = vadd.f32 %v1965, %v1951
    %v1967 = vadd.f32 %v1966, %v1952
    %v1968 = vadd.f32 %v1967, %v1953
    %v1969 = vadd.f32 %v1968, %v1954
    %v1970 = vadd.f32 %v1969, %v1955
    %v1971 = vadd.f32 %v1970, %v1956
    %v1972 = vrot.slane %v1971, 4
    %v1973 = vadd.f32 %v1971, %v1972
    %v1974 = vrot.slane %v1973, 2
    %v1975 = vadd.f32 %v1973, %v1974
    %v1976 = vrot.slane %v1975, 1
    %v1977 = vadd.f32 %v1975, %v1976
    %v1978 = vadd.f32 %v1957, %v1958
    %v1979 = vadd.f32 %v1978, %v1959
    %v1980 = vadd.f32 %v1979, %v1960
    %v1981 = vadd.f32 %v1980, %v1961
    %v1982 = vadd.f32 %v1981, %v1962
    %v1983 = vadd.f32 %v1982, %v1963
    %v1984 = vadd.f32 %v1983, %v1964
    %v1985 = vrot.slane %v1984, 4
    %v1986 = vadd.f32 %v1984, %v1985
    %v1987 = vrot.slane %v1986, 2
    %v1988 = vadd.f32 %v1986, %v1987
    %v1989 = vrot.slane %v1988, 1
    %v1990 = vadd.f32 %v1988, %v1989
    %v1991 = vmul.f32 %v1977, %v1050
    %v1992 = vmul.f32 %v1990, %v1050
    %vm1995 = vcmask 1041409
    %v1996 = vsel %vm1995, %v1052, %v1051
    %v2000 = vsel %vm1995, %v1376, %v1375
    %v2004 = vsel %vm1995, %v1668, %v1667
    %v2008 = vsel %vm1995, %v1992, %v1991
    %v2010 = vpack.c.bf16 %v1996, %v1996
    %v2011 = vpack.c.bf16 %v2000, %v2000
    %v2012 = vpack.c.bf16 %v2004, %v2004
    %v2013 = vpack.c.bf16 %v2008, %v2008
    %v2014 = vld [vmem:[#allocation2] sm:$0xff]
    %v2015 = vld [vmem:[#allocation2 + $0x8] sm:$0xff]
    %v2016 = vld [vmem:[#allocation2 + $0x10] sm:$0xff]
    %v2017 = vld [vmem:[#allocation2 + $0x18] sm:$0xff]
    %v2018 = vld [vmem:[#allocation2 + $0x20] sm:$0xff]
    %v2019 = vld [vmem:[#allocation2 + $0x28] sm:$0xff]
    %v2020 = vld [vmem:[#allocation2 + $0x30] sm:$0xff]
    %v2021 = vld [vmem:[#allocation2 + $0x38] sm:$0xff]
    %v2022 = vld [vmem:[#allocation2 + $0x40] sm:$0xff]
    %v2023 = vld [vmem:[#allocation2 + $0x48] sm:$0xff]
    %v2024 = vld [vmem:[#allocation2 + $0x50] sm:$0xff]
    %v2025 = vld [vmem:[#allocation2 + $0x58] sm:$0xff]
    %v2026 = vld [vmem:[#allocation2 + $0x60] sm:$0xff]
    %v2027 = vld [vmem:[#allocation2 + $0x68] sm:$0xff]
    %v2028 = vld [vmem:[#allocation2 + $0x70] sm:$0xff]
    %v2029 = vld [vmem:[#allocation2 + $0x78] sm:$0xff]
    %v2030 = vld [vmem:[#allocation2 + $0x80] sm:$0xff]
    %v2031 = vld [vmem:[#allocation2 + $0x88] sm:$0xff]
    %v2032 = vld [vmem:[#allocation2 + $0x90] sm:$0xff]
    %v2033 = vld [vmem:[#allocation2 + $0x98] sm:$0xff]
    %v2034 = vld [vmem:[#allocation2 + $0xa0] sm:$0xff]
    %v2035 = vld [vmem:[#allocation2 + $0xa8] sm:$0xff]
    %v2036 = vld [vmem:[#allocation2 + $0xb0] sm:$0xff]
    %v2037 = vld [vmem:[#allocation2 + $0xb8] sm:$0xff]
    %v2038 = vld [vmem:[#allocation2 + $0xc0] sm:$0xff]
    %v2039 = vld [vmem:[#allocation2 + $0xc8] sm:$0xff]
    %v2040 = vld [vmem:[#allocation2 + $0xd0] sm:$0xff]
    %v2041 = vld [vmem:[#allocation2 + $0xd8] sm:$0xff]
    %v2042 = vld [vmem:[#allocation2 + $0xe0] sm:$0xff]
    %v2043 = vld [vmem:[#allocation2 + $0xe8] sm:$0xff]
    %v2044 = vld [vmem:[#allocation2 + $0xf0] sm:$0xff]
    %v2045 = vld [vmem:[#allocation2 + $0xf8] sm:$0xff]
    %v2046 = vld [vmem:[#allocation2 + $0x100] sm:$0xff]
    %v2047 = vld [vmem:[#allocation2 + $0x108] sm:$0xff]
    %v2048 = vld [vmem:[#allocation2 + $0x110] sm:$0xff]
    %v2049 = vld [vmem:[#allocation2 + $0x118] sm:$0xff]
    %v2050 = vld [vmem:[#allocation2 + $0x120] sm:$0xff]
    %v2051 = vld [vmem:[#allocation2 + $0x128] sm:$0xff]
    %v2052 = vld [vmem:[#allocation2 + $0x130] sm:$0xff]
    %v2053 = vld [vmem:[#allocation2 + $0x138] sm:$0xff]
    %v2054 = vld [vmem:[#allocation2 + $0x140] sm:$0xff]
    %v2055 = vld [vmem:[#allocation2 + $0x148] sm:$0xff]
    %v2056 = vld [vmem:[#allocation2 + $0x150] sm:$0xff]
    %v2057 = vld [vmem:[#allocation2 + $0x158] sm:$0xff]
    %v2058 = vld [vmem:[#allocation2 + $0x160] sm:$0xff]
    %v2059 = vld [vmem:[#allocation2 + $0x168] sm:$0xff]
    %v2060 = vld [vmem:[#allocation2 + $0x170] sm:$0xff]
    %v2061 = vld [vmem:[#allocation2 + $0x178] sm:$0xff]
    %v2062 = vld [vmem:[#allocation2 + $0x180] sm:$0xff]
    %v2063 = vld [vmem:[#allocation2 + $0x188] sm:$0xff]
    %v2064 = vld [vmem:[#allocation2 + $0x190] sm:$0xff]
    %v2065 = vld [vmem:[#allocation2 + $0x198] sm:$0xff]
    %v2066 = vld [vmem:[#allocation2 + $0x1a0] sm:$0xff]
    %v2067 = vld [vmem:[#allocation2 + $0x1a8] sm:$0xff]
    %v2068 = vld [vmem:[#allocation2 + $0x1b0] sm:$0xff]
    %v2069 = vld [vmem:[#allocation2 + $0x1b8] sm:$0xff]
    %v2070 = vld [vmem:[#allocation2 + $0x1c0] sm:$0xff]
    %v2071 = vld [vmem:[#allocation2 + $0x1c8] sm:$0xff]
    %v2072 = vld [vmem:[#allocation2 + $0x1d0] sm:$0xff]
    %v2073 = vld [vmem:[#allocation2 + $0x1d8] sm:$0xff]
    %v2074 = vld [vmem:[#allocation2 + $0x1e0] sm:$0xff]
    %v2075 = vld [vmem:[#allocation2 + $0x1e8] sm:$0xff]
    %v2076 = vld [vmem:[#allocation2 + $0x1f0] sm:$0xff]
    %v2077 = vld [vmem:[#allocation2 + $0x1f8] sm:$0xff]
    %v2078 = vld [vmem:[%s6] sm:$0x3]
    %v2080 = vlaneseq
    %v2081 = vshrl.u32 %v2080, 7
    %v2082 = vsub.s32 0, %v2081
    %v2083 = vrot.slane %v2078, %v2082
    %v2084 = vlaneseq
    %v2085 = vshrl.u32 %v2084, 7
    %v2086 = vsub.s32 1, %v2085
    %v2087 = vrot.slane %v2078, %v2086
    %v2154 = vunpack.c.l.b16 %v2014
    %v2155 = vunpack.c.h.b16 %v2014
    %v2156 = vunpack.c.l.b16 %v2015
    %v2157 = vunpack.c.h.b16 %v2015
    %v2158 = vunpack.c.l.b16 %v2016
    %v2159 = vunpack.c.h.b16 %v2016
    %v2160 = vunpack.c.l.b16 %v2017
    %v2161 = vunpack.c.h.b16 %v2017
    %v2162 = vunpack.c.l.b16 %v2018
    %v2163 = vunpack.c.h.b16 %v2018
    %v2164 = vunpack.c.l.b16 %v2019
    %v2165 = vunpack.c.h.b16 %v2019
    %v2166 = vunpack.c.l.b16 %v2020
    %v2167 = vunpack.c.h.b16 %v2020
    %v2168 = vunpack.c.l.b16 %v2021
    %v2169 = vunpack.c.h.b16 %v2021
    %v2170 = vunpack.c.l.b16 %v2022
    %v2171 = vunpack.c.h.b16 %v2022
    %v2172 = vunpack.c.l.b16 %v2023
    %v2173 = vunpack.c.h.b16 %v2023
    %v2174 = vunpack.c.l.b16 %v2024
    %v2175 = vunpack.c.h.b16 %v2024
    %v2176 = vunpack.c.l.b16 %v2025
    %v2177 = vunpack.c.h.b16 %v2025
    %v2178 = vunpack.c.l.b16 %v2026
    %v2179 = vunpack.c.h.b16 %v2026
    %v2180 = vunpack.c.l.b16 %v2027
    %v2181 = vunpack.c.h.b16 %v2027
    %v2182 = vunpack.c.l.b16 %v2028
    %v2183 = vunpack.c.h.b16 %v2028
    %v2184 = vunpack.c.l.b16 %v2029
    %v2185 = vunpack.c.h.b16 %v2029
    %v2186 = vunpack.c.l.b16 %v2030
    %v2187 = vunpack.c.h.b16 %v2030
    %v2188 = vunpack.c.l.b16 %v2031
    %v2189 = vunpack.c.h.b16 %v2031
    %v2190 = vunpack.c.l.b16 %v2032
    %v2191 = vunpack.c.h.b16 %v2032
    %v2192 = vunpack.c.l.b16 %v2033
    %v2193 = vunpack.c.h.b16 %v2033
    %v2194 = vunpack.c.l.b16 %v2034
    %v2195 = vunpack.c.h.b16 %v2034
    %v2196 = vunpack.c.l.b16 %v2035
    %v2197 = vunpack.c.h.b16 %v2035
    %v2198 = vunpack.c.l.b16 %v2036
    %v2199 = vunpack.c.h.b16 %v2036
    %v2200 = vunpack.c.l.b16 %v2037
    %v2201 = vunpack.c.h.b16 %v2037
    %v2202 = vunpack.c.l.b16 %v2038
    %v2203 = vunpack.c.h.b16 %v2038
    %v2204 = vunpack.c.l.b16 %v2039
    %v2205 = vunpack.c.h.b16 %v2039
    %v2206 = vunpack.c.l.b16 %v2040
    %v2207 = vunpack.c.h.b16 %v2040
    %v2208 = vunpack.c.l.b16 %v2041
    %v2209 = vunpack.c.h.b16 %v2041
    %v2210 = vunpack.c.l.b16 %v2042
    %v2211 = vunpack.c.h.b16 %v2042
    %v2212 = vunpack.c.l.b16 %v2043
    %v2213 = vunpack.c.h.b16 %v2043
    %v2214 = vunpack.c.l.b16 %v2044
    %v2215 = vunpack.c.h.b16 %v2044
    %v2216 = vunpack.c.l.b16 %v2045
    %v2217 = vunpack.c.h.b16 %v2045
    %v2218 = vunpack.c.l.b16 %v2046
    %v2219 = vunpack.c.h.b16 %v2046
    %v2220 = vunpack.c.l.b16 %v2047
    %v2221 = vunpack.c.h.b16 %v2047
    %v2222 = vunpack.c.l.b16 %v2048
    %v2223 = vunpack.c.h.b16 %v2048
    %v2224 = vunpack.c.l.b16 %v2049
    %v2225 = vunpack.c.h.b16 %v2049
    %v2226 = vunpack.c.l.b16 %v2050
    %v2227 = vunpack.c.h.b16 %v2050
    %v2228 = vunpack.c.l.b16 %v2051
    %v2229 = vunpack.c.h.b16 %v2051
    %v2230 = vunpack.c.l.b16 %v2052
    %v2231 = vunpack.c.h.b16 %v2052
    %v2232 = vunpack.c.l.b16 %v2053
    %v2233 = vunpack.c.h.b16 %v2053
    %v2234 = vunpack.c.l.b16 %v2054
    %v2235 = vunpack.c.h.b16 %v2054
    %v2236 = vunpack.c.l.b16 %v2055
    %v2237 = vunpack.c.h.b16 %v2055
    %v2238 = vunpack.c.l.b16 %v2056
    %v2239 = vunpack.c.h.b16 %v2056
    %v2240 = vunpack.c.l.b16 %v2057
    %v2241 = vunpack.c.h.b16 %v2057
    %v2242 = vunpack.c.l.b16 %v2058
    %v2243 = vunpack.c.h.b16 %v2058
    %v2244 = vunpack.c.l.b16 %v2059
    %v2245 = vunpack.c.h.b16 %v2059
    %v2246 = vunpack.c.l.b16 %v2060
    %v2247 = vunpack.c.h.b16 %v2060
    %v2248 = vunpack.c.l.b16 %v2061
    %v2249 = vunpack.c.h.b16 %v2061
    %v2250 = vunpack.c.l.b16 %v2062
    %v2251 = vunpack.c.h.b16 %v2062
    %v2252 = vunpack.c.l.b16 %v2063
    %v2253 = vunpack.c.h.b16 %v2063
    %v2254 = vunpack.c.l.b16 %v2064
    %v2255 = vunpack.c.h.b16 %v2064
    %v2256 = vunpack.c.l.b16 %v2065
    %v2257 = vunpack.c.h.b16 %v2065
    %v2258 = vunpack.c.l.b16 %v2066
    %v2259 = vunpack.c.h.b16 %v2066
    %v2260 = vunpack.c.l.b16 %v2067
    %v2261 = vunpack.c.h.b16 %v2067
    %v2262 = vunpack.c.l.b16 %v2068
    %v2263 = vunpack.c.h.b16 %v2068
    %v2264 = vunpack.c.l.b16 %v2069
    %v2265 = vunpack.c.h.b16 %v2069
    %v2266 = vunpack.c.l.b16 %v2070
    %v2267 = vunpack.c.h.b16 %v2070
    %v2268 = vunpack.c.l.b16 %v2071
    %v2269 = vunpack.c.h.b16 %v2071
    %v2270 = vunpack.c.l.b16 %v2072
    %v2271 = vunpack.c.h.b16 %v2072
    %v2272 = vunpack.c.l.b16 %v2073
    %v2273 = vunpack.c.h.b16 %v2073
    %v2274 = vunpack.c.l.b16 %v2074
    %v2275 = vunpack.c.h.b16 %v2074
    %v2276 = vunpack.c.l.b16 %v2075
    %v2277 = vunpack.c.h.b16 %v2075
    %v2278 = vunpack.c.l.b16 %v2076
    %v2279 = vunpack.c.h.b16 %v2076
    %v2280 = vunpack.c.l.b16 %v2077
    %v2281 = vunpack.c.h.b16 %v2077
    %v2282 = vpack.c.b16 %v2156, %v2154
    %v2283 = vpack.c.b16 %v2157, %v2155
    %v2284 = vpack.c.b16 %v2160, %v2158
    %v2285 = vpack.c.b16 %v2161, %v2159
    %v2286 = vpack.c.b16 %v2164, %v2162
    %v2287 = vpack.c.b16 %v2165, %v2163
    %v2288 = vpack.c.b16 %v2168, %v2166
    %v2289 = vpack.c.b16 %v2169, %v2167
    %v2290 = vpack.c.b16 %v2172, %v2170
    %v2291 = vpack.c.b16 %v2173, %v2171
    %v2292 = vpack.c.b16 %v2176, %v2174
    %v2293 = vpack.c.b16 %v2177, %v2175
    %v2294 = vpack.c.b16 %v2180, %v2178
    %v2295 = vpack.c.b16 %v2181, %v2179
    %v2296 = vpack.c.b16 %v2184, %v2182
    %v2297 = vpack.c.b16 %v2185, %v2183
    %v2298 = vpack.c.b16 %v2188, %v2186
    %v2299 = vpack.c.b16 %v2189, %v2187
    %v2300 = vpack.c.b16 %v2192, %v2190
    %v2301 = vpack.c.b16 %v2193, %v2191
    %v2302 = vpack.c.b16 %v2196, %v2194
    %v2303 = vpack.c.b16 %v2197, %v2195
    %v2304 = vpack.c.b16 %v2200, %v2198
    %v2305 = vpack.c.b16 %v2201, %v2199
    %v2306 = vpack.c.b16 %v2204, %v2202
    %v2307 = vpack.c.b16 %v2205, %v2203
    %v2308 = vpack.c.b16 %v2208, %v2206
    %v2309 = vpack.c.b16 %v2209, %v2207
    %v2310 = vpack.c.b16 %v2212, %v2210
    %v2311 = vpack.c.b16 %v2213, %v2211
    %v2312 = vpack.c.b16 %v2216, %v2214
    %v2313 = vpack.c.b16 %v2217, %v2215
    %v2314 = vpack.c.b16 %v2220, %v2218
    %v2315 = vpack.c.b16 %v2221, %v2219
    %v2316 = vpack.c.b16 %v2224, %v2222
    %v2317 = vpack.c.b16 %v2225, %v2223
    %v2318 = vpack.c.b16 %v2228, %v2226
    %v2319 = vpack.c.b16 %v2229, %v2227
    %v2320 = vpack.c.b16 %v2232, %v2230
    %v2321 = vpack.c.b16 %v2233, %v2231
    %v2322 = vpack.c.b16 %v2236, %v2234
    %v2323 = vpack.c.b16 %v2237, %v2235
    %v2324 = vpack.c.b16 %v2240, %v2238
    %v2325 = vpack.c.b16 %v2241, %v2239
    %v2326 = vpack.c.b16 %v2244, %v2242
    %v2327 = vpack.c.b16 %v2245, %v2243
    %v2328 = vpack.c.b16 %v2248, %v2246
    %v2329 = vpack.c.b16 %v2249, %v2247
    %v2330 = vpack.c.b16 %v2252, %v2250
    %v2331 = vpack.c.b16 %v2253, %v2251
    %v2332 = vpack.c.b16 %v2256, %v2254
    %v2333 = vpack.c.b16 %v2257, %v2255
    %v2334 = vpack.c.b16 %v2260, %v2258
    %v2335 = vpack.c.b16 %v2261, %v2259
    %v2336 = vpack.c.b16 %v2264, %v2262
    %v2337 = vpack.c.b16 %v2265, %v2263
    %v2338 = vpack.c.b16 %v2268, %v2266
    %v2339 = vpack.c.b16 %v2269, %v2267
    %v2340 = vpack.c.b16 %v2272, %v2270
    %v2341 = vpack.c.b16 %v2273, %v2271
    %v2342 = vpack.c.b16 %v2276, %v2274
    %v2343 = vpack.c.b16 %v2277, %v2275
    %v2344 = vpack.c.b16 %v2280, %v2278
    %v2345 = vpack.c.b16 %v2281, %v2279
    %2410 = vmatprep.subr.bf16.mxu0 %v2283
    %2411 = vmatpush1.bf16.msra.mxu0 %v2282
    %2412 = vmatprep.subr.bf16.mxu0 %v2285
    %2413 = vmatpush1.bf16.msra.mxu0 %v2284
    %2414 = vmatprep.subr.bf16.mxu0 %v2287
    %2415 = vmatpush1.bf16.msra.mxu0 %v2286
    %2416 = vmatprep.subr.bf16.mxu0 %v2289
    %2417 = vmatpush1.bf16.msra.mxu0 %v2288
    %2418 = vmatprep.subr.bf16.mxu0 %v2291
    %2419 = vmatpush1.bf16.msra.mxu0 %v2290
    %2420 = vmatprep.subr.bf16.mxu0 %v2293
    %2421 = vmatpush1.bf16.msra.mxu0 %v2292
    %2422 = vmatprep.subr.bf16.mxu0 %v2295
    %2423 = vmatpush1.bf16.msra.mxu0 %v2294
    %2424 = vmatprep.subr.bf16.mxu0 %v2297
    %2425 = vmatpush1.bf16.msra.mxu0 %v2296
    %2426 = vmatprep.subr.bf16.mxu0 %v2299
    %2427 = vmatpush1.bf16.msra.mxu0 %v2298
    %2428 = vmatprep.subr.bf16.mxu0 %v2301
    %2429 = vmatpush1.bf16.msra.mxu0 %v2300
    %2430 = vmatprep.subr.bf16.mxu0 %v2303
    %2431 = vmatpush1.bf16.msra.mxu0 %v2302
    %2432 = vmatprep.subr.bf16.mxu0 %v2305
    %2433 = vmatpush1.bf16.msra.mxu0 %v2304
    %2434 = vmatprep.subr.bf16.mxu0 %v2307
    %2435 = vmatpush1.bf16.msra.mxu0 %v2306
    %2436 = vmatprep.subr.bf16.mxu0 %v2309
    %2437 = vmatpush1.bf16.msra.mxu0 %v2308
    %2438 = vmatprep.subr.bf16.mxu0 %v2311
    %2439 = vmatpush1.bf16.msra.mxu0 %v2310
    %2440 = vmatprep.subr.bf16.mxu0 %v2313
    %2441 = vmatpush1.bf16.msra.mxu0 %v2312
    %2442 = vmatprep.mubr.bf16.mxu0 %v2011
    %2443 = vmatmul.mubr.bf16.gmra.mrb[0].mxu0 %v2010
    %v2444 = vpop.f32.mrb[0].mxu0
    %v2445 = vadd.f32 %v2083, %v2444
    %v2446 = vpop.f32.mrb[0].mxu0
    %v2447 = vadd.f32 %v2087, %v2446
    %v2448 = vpop.f32.mrb[0].mxu0
    %v2449 = vpop.f32.mrb[0].mxu0
    %2450 = vdwg.mxu0
    %2451 = vmatprep.subr.bf16.mxu0 %v2315
    %2452 = vmatpush1.bf16.msra.mxu0 %v2314
    %2453 = vmatprep.subr.bf16.mxu0 %v2317
    %2454 = vmatpush1.bf16.msra.mxu0 %v2316
    %2455 = vmatprep.subr.bf16.mxu0 %v2319
    %2456 = vmatpush1.bf16.msra.mxu0 %v2318
    %2457 = vmatprep.subr.bf16.mxu0 %v2321
    %2458 = vmatpush1.bf16.msra.mxu0 %v2320
    %2459 = vmatprep.subr.bf16.mxu0 %v2323
    %2460 = vmatpush1.bf16.msra.mxu0 %v2322
    %2461 = vmatprep.subr.bf16.mxu0 %v2325
    %2462 = vmatpush1.bf16.msra.mxu0 %v2324
    %2463 = vmatprep.subr.bf16.mxu0 %v2327
    %2464 = vmatpush1.bf16.msra.mxu0 %v2326
    %2465 = vmatprep.subr.bf16.mxu0 %v2329
    %2466 = vmatpush1.bf16.msra.mxu0 %v2328
    %2467 = vmatprep.subr.bf16.mxu0 %v2331
    %2468 = vmatpush1.bf16.msra.mxu0 %v2330
    %2469 = vmatprep.subr.bf16.mxu0 %v2333
    %2470 = vmatpush1.bf16.msra.mxu0 %v2332
    %2471 = vmatprep.subr.bf16.mxu0 %v2335
    %2472 = vmatpush1.bf16.msra.mxu0 %v2334
    %2473 = vmatprep.subr.bf16.mxu0 %v2337
    %2474 = vmatpush1.bf16.msra.mxu0 %v2336
    %2475 = vmatprep.subr.bf16.mxu0 %v2339
    %2476 = vmatpush1.bf16.msra.mxu0 %v2338
    %2477 = vmatprep.subr.bf16.mxu0 %v2341
    %2478 = vmatpush1.bf16.msra.mxu0 %v2340
    %2479 = vmatprep.subr.bf16.mxu0 %v2343
    %2480 = vmatpush1.bf16.msra.mxu0 %v2342
    %2481 = vmatprep.subr.bf16.mxu0 %v2345
    %2482 = vmatpush1.bf16.msra.mxu0 %v2344
    %2483 = vmatprep.mubr.bf16.mxu0 %v2013
    %2484 = vmatmul.mubr.bf16.gmra.mrb[0].mxu0 %v2012
    %v2485 = vpop.f32.mrb[0].mxu0
    %v2486 = vadd.f32 %v2445, %v2485
    %v2487 = vpop.f32.mrb[0].mxu0
    %v2488 = vadd.f32 %v2447, %v2487
    %v2489 = vpop.f32.mrb[0].mxu0
    %v2490 = vpop.f32.mrb[0].mxu0
    %2491 = vdwg.mxu0
    %v2492 = vmax.f32 %v2486, 0.0
    %v2493 = vmax.f32 %v2488, 0.0
    %v2494 = vpack.c.bf16 %v2492, %v2492
    %v2495 = vpack.c.bf16 %v2493, %v2493
    %v2496 = vld [vmem:[#allocation5] sm:$0xf]
    %v2497 = vld [vmem:[#allocation5 + $0x4] sm:$0xf]
    %v2498 = vld [vmem:[#allocation5 + $0x8] sm:$0xf]
    %v2499 = vld [vmem:[#allocation5 + $0xc] sm:$0xf]
    %v2500 = vld [vmem:[#allocation5 + $0x10] sm:$0xf]
    %v2501 = vld [vmem:[#allocation5 + $0x14] sm:$0xf]
    %v2502 = vld [vmem:[#allocation5 + $0x18] sm:$0xf]
    %v2503 = vld [vmem:[#allocation5 + $0x1c] sm:$0xf]
    %v2504 = vld [vmem:[#allocation5 + $0x20] sm:$0xf]
    %v2505 = vld [vmem:[#allocation5 + $0x24] sm:$0xf]
    %v2506 = vld [vmem:[#allocation5 + $0x28] sm:$0xf]
    %v2507 = vld [vmem:[#allocation5 + $0x2c] sm:$0xf]
    %v2508 = vld [vmem:[#allocation5 + $0x30] sm:$0xf]
    %v2509 = vld [vmem:[#allocation5 + $0x34] sm:$0xf]
    %v2510 = vld [vmem:[#allocation5 + $0x38] sm:$0xf]
    %v2511 = vld [vmem:[#allocation5 + $0x3c] sm:$0xf]
    %v2512 = vld [vmem:[#allocation5 + $0x40] sm:$0xf]
    %v2513 = vld [vmem:[#allocation5 + $0x44] sm:$0xf]
    %v2514 = vld [vmem:[#allocation5 + $0x48] sm:$0xf]
    %v2515 = vld [vmem:[#allocation5 + $0x4c] sm:$0xf]
    %v2516 = vld [vmem:[#allocation5 + $0x50] sm:$0xf]
    %v2517 = vld [vmem:[#allocation5 + $0x54] sm:$0xf]
    %v2518 = vld [vmem:[#allocation5 + $0x58] sm:$0xf]
    %v2519 = vld [vmem:[#allocation5 + $0x5c] sm:$0xf]
    %v2520 = vld [vmem:[#allocation5 + $0x60] sm:$0xf]
    %v2521 = vld [vmem:[#allocation5 + $0x64] sm:$0xf]
    %v2522 = vld [vmem:[#allocation5 + $0x68] sm:$0xf]
    %v2523 = vld [vmem:[#allocation5 + $0x6c] sm:$0xf]
    %v2524 = vld [vmem:[#allocation5 + $0x70] sm:$0xf]
    %v2525 = vld [vmem:[#allocation5 + $0x74] sm:$0xf]
    %v2526 = vld [vmem:[#allocation5 + $0x78] sm:$0xf]
    %v2527 = vld [vmem:[#allocation5 + $0x7c] sm:$0xf]
    %v2528 = vld [vmem:[%s8] sm:$0x1]
    %v2530 = vlaneseq
    %v2531 = vshrl.u32 %v2530, 7
    %v2532 = vsub.s32 0, %v2531
    %v2533 = vrot.slane %v2528, %v2532
    %v2567 = vunpack.c.l.b16 %v2496
    %v2568 = vunpack.c.l.b16 %v2497
    %v2569 = vunpack.c.l.b16 %v2498
    %v2570 = vunpack.c.l.b16 %v2499
    %v2571 = vunpack.c.l.b16 %v2500
    %v2572 = vunpack.c.l.b16 %v2501
    %v2573 = vunpack.c.l.b16 %v2502
    %v2574 = vunpack.c.l.b16 %v2503
    %v2575 = vunpack.c.l.b16 %v2504
    %v2576 = vunpack.c.l.b16 %v2505
    %v2577 = vunpack.c.l.b16 %v2506
    %v2578 = vunpack.c.l.b16 %v2507
    %v2579 = vunpack.c.l.b16 %v2508
    %v2580 = vunpack.c.l.b16 %v2509
    %v2581 = vunpack.c.l.b16 %v2510
    %v2582 = vunpack.c.l.b16 %v2511
    %v2583 = vunpack.c.l.b16 %v2512
    %v2584 = vunpack.c.l.b16 %v2513
    %v2585 = vunpack.c.l.b16 %v2514
    %v2586 = vunpack.c.l.b16 %v2515
    %v2587 = vunpack.c.l.b16 %v2516
    %v2588 = vunpack.c.l.b16 %v2517
    %v2589 = vunpack.c.l.b16 %v2518
    %v2590 = vunpack.c.l.b16 %v2519
    %v2591 = vunpack.c.l.b16 %v2520
    %v2592 = vunpack.c.l.b16 %v2521
    %v2593 = vunpack.c.l.b16 %v2522
    %v2594 = vunpack.c.l.b16 %v2523
    %v2595 = vunpack.c.l.b16 %v2524
    %v2596 = vunpack.c.l.b16 %v2525
    %v2597 = vunpack.c.l.b16 %v2526
    %v2598 = vunpack.c.l.b16 %v2527
    %v2599 = vpack.c.b16 %v2568, %v2567
    %v2600 = vpack.c.b16 %v2570, %v2569
    %v2601 = vpack.c.b16 %v2572, %v2571
    %v2602 = vpack.c.b16 %v2574, %v2573
    %v2603 = vpack.c.b16 %v2576, %v2575
    %v2604 = vpack.c.b16 %v2578, %v2577
    %v2605 = vpack.c.b16 %v2580, %v2579
    %v2606 = vpack.c.b16 %v2582, %v2581
    %v2607 = vpack.c.b16 %v2584, %v2583
    %v2608 = vpack.c.b16 %v2586, %v2585
    %v2609 = vpack.c.b16 %v2588, %v2587
    %v2610 = vpack.c.b16 %v2590, %v2589
    %v2611 = vpack.c.b16 %v2592, %v2591
    %v2612 = vpack.c.b16 %v2594, %v2593
    %v2613 = vpack.c.b16 %v2596, %v2595
    %v2614 = vpack.c.b16 %v2598, %v2597
    %2631 = vmatprep.subr.bf16.mxu0 0
    %2632 = vmatpush1.bf16.msra.mxu0 %v2599
    %2633 = vmatprep.subr.bf16.mxu0 0
    %2634 = vmatpush1.bf16.msra.mxu0 %v2600
    %2635 = vmatprep.subr.bf16.mxu0 0
    %2636 = vmatpush1.bf16.msra.mxu0 %v2601
    %2637 = vmatprep.subr.bf16.mxu0 0
    %2638 = vmatpush1.bf16.msra.mxu0 %v2602
    %2639 = vmatprep.subr.bf16.mxu0 0
    %2640 = vmatpush1.bf16.msra.mxu0 %v2603
    %2641 = vmatprep.subr.bf16.mxu0 0
    %2642 = vmatpush1.bf16.msra.mxu0 %v2604
    %2643 = vmatprep.subr.bf16.mxu0 0
    %2644 = vmatpush1.bf16.msra.mxu0 %v2605
    %2645 = vmatprep.subr.bf16.mxu0 0
    %2646 = vmatpush1.bf16.msra.mxu0 %v2606
    %2647 = vmatprep.subr.bf16.mxu0 0
    %2648 = vmatpush1.bf16.msra.mxu0 %v2607
    %2649 = vmatprep.subr.bf16.mxu0 0
    %2650 = vmatpush1.bf16.msra.mxu0 %v2608
    %2651 = vmatprep.subr.bf16.mxu0 0
    %2652 = vmatpush1.bf16.msra.mxu0 %v2609
    %2653 = vmatprep.subr.bf16.mxu0 0
    %2654 = vmatpush1.bf16.msra.mxu0 %v2610
    %2655 = vmatprep.subr.bf16.mxu0 0
    %2656 = vmatpush1.bf16.msra.mxu0 %v2611
    %2657 = vmatprep.subr.bf16.mxu0 0
    %2658 = vmatpush1.bf16.msra.mxu0 %v2612
    %2659 = vmatprep.subr.bf16.mxu0 0
    %2660 = vmatpush1.bf16.msra.mxu0 %v2613
    %2661 = vmatprep.subr.bf16.mxu0 0
    %2662 = vmatpush1.bf16.msra.mxu0 %v2614
    %2663 = vmatprep.mubr.bf16.mxu0 %v2495
    %2664 = vmatmul.mubr.bf16.gmra.mrb[0].mxu0 %v2494
    %v2665 = vpop.f32.mrb[0].mxu0
    %v2666 = vadd.f32 %v2533, %v2665
    %v2667 = vpop.f32.mrb[0].mxu0
    %v2668 = vpop.f32.mrb[0].mxu0
    %v2669 = vpop.f32.mrb[0].mxu0
    %2670 = vdwg.mxu0
    %2671 = vst [vmem:[#allocation7] sm:$0x3] %v2666
    // Predicated region
    $region46: #{tpu_custom_call.1} parent=1 // pred_check
      _
    $region47: #{tpu_custom_call.1} parent=1 // pred_check_branch
      %2673 = sbr.rel (0) target = $region49
    $region48: #{tpu_custom_call.1} parent=1 // pred_region
      %s2675 = ssub.s32 32, 32
      %2676 = vsyncadd [#allocation4], %s2675
      %s2678 = sshll.u32 [#allocation7], 4
      %s2679 = int_to_ptr.vmem [resolvable:$true] %s2678
      %2681 = dma.vmem_to_hbm [thread:$0]  %s2679, 32, %s9, [#allocation4]
    $region49: #{tpu_custom_call.1} parent=1 // pred_fallthru
      _
    // Predicated region
    $region50: #{tpu_custom_call.1} parent=1 // pred_check
      _
    $region51: #{tpu_custom_call.1} parent=1 // pred_check_branch
      %2683 = sbr.rel (0) target = $region53
    $region52: #{tpu_custom_call.1} parent=1 // pred_region
      %2684 = dma.done [#allocation4], 32
    $region53: #{tpu_custom_call.1} parent=1 // pred_fallthru
      _
    %2685 = vsyncpa [#allocation3], 1
    %2686 = vsyncpa [#allocation6], 1
    %2687 = vsyncpa [#allocation4], 1

</llo_original>
